<compile_context>
chip_gen: v6e
topology: v6e:2x2x1
jax: 0.10.0
libtpu: 0.0.40
codegen_flags: <defaults>
</compile_context>

<pallas_src>
import functools

import jax
import jax.numpy as jnp
from jax.experimental import pallas as pl
from jax.experimental.pallas import tpu as pltpu

ITEM_COUNT = 2771
CATE_COUNT = 6
HIDDEN_UNITS = 80


# ----------------------------------------------------------------------------
# Pallas kernel: everything after the embedding gathers.
# ----------------------------------------------------------------------------
def din_kernel(
    # per-example data, blocked over the batch axis ---------------------------
    i_emb_ref,    # [Bb, H]        target item||cate embedding      (compute dtype)
    his_ref,      # [Bb, T, H]     history item||cate embeddings    (compute dtype)
    aux_ref,      # [Bb, 4]        [item_bias, sl, label, valid]    (f32)
    # weights (constant index maps -> stay VMEM resident across the grid) -----
    aq_ref,       # [H, H]  folded atten_fc1: multiplies q
    ah_ref,       # [H, H]  folded atten_fc1: multiplies his
    ap_ref,       # [H, H]  folded atten_fc1: multiplies q*his
    ab1_ref,      # [1, H]  (f32)
    aw2_ref, ab2_ref,            # atten_fc2: [H, H/2], [1, H/2]
    aw3_ref, ab3_ref,            # atten_fc3 as a [1, H/2] row, [1, 1]
    ow_ref, ob_ref,              # out_fc:   [H, H], [1, H]
    dw1o_ref, dw1q_ref, db1_ref, # din_fc1 split at the concat: [H,H], [H,H], [1,H]
    dw2_ref, db2_ref,            # din_fc2: [H, H/2], [1, H/2]
    dw3_ref, db3_ref,            # din_fc3 as a [1, H/2] row, [1, 1]
    # outputs ------------------------------------------------------------------
    probs_ref,    # [Bb, 128]    sigmoid(logits), replicated across lanes
    loss_ref,     # [1, 8, 128]  per-block partial BCE sum, replicated
):
    f32 = jnp.float32
    sig = jax.nn.sigmoid

    q = i_emb_ref[...]                   # [Bb, H]     compute dtype
    his = his_ref[...]                   # [Bb, T, H]  compute dtype
    aux = aux_ref[...]                   # [Bb, 4]     f32
    Bb, T, H = his.shape
    cdt = his.dtype

    ibias = aux[:, 0:1]                  # [Bb, 1] f32
    sl_i = aux[:, 1:2].astype(jnp.int32)
    lbl = aux[:, 2:3]
    valid = aux[:, 3:4]

    def mm(a, w_ref):
        return jnp.dot(a, w_ref[...], preferred_element_type=f32)

    # ----- attention fc1, algebraically folded (no [Bb,T,4H] concat) -----
    u = mm(q, aq_ref) + ab1_ref[...]                          # [Bb, H]   f32
    qhis = q[:, None, :] * his                                # [Bb, T, H] cdt
    his2 = his.reshape(Bb * T, H)
    qhis2 = qhis.reshape(Bb * T, H)
    z = mm(his2, ah_ref) + mm(qhis2, ap_ref)                  # [Bb*T, H] f32
    z = z.reshape(Bb, T, H) + u[:, None, :]                   # lazy broadcast add
    d1 = sig(z.astype(cdt))                                   # [Bb, T, H] cdt
    d2 = sig((mm(d1.reshape(Bb * T, H), aw2_ref) + ab2_ref[...]).astype(cdt))
    # atten_fc3 has one output unit: VPU broadcast-mul + lane reduce (no MXU).
    d3 = sig(jnp.sum(d2 * aw3_ref[...], axis=-1, keepdims=True) + ab3_ref[...])

    scores = d3.reshape(Bb, T, 1)                             # [Bb, T, 1] f32
    pos = jax.lax.broadcasted_iota(jnp.int32, (Bb, T, 1), 1)
    w = jnp.where(pos < sl_i[:, :, None], scores, 0.0).astype(cdt)
    # weighted history sum: multiply in compute dtype, accumulate in f32.
    att = jnp.sum(w * his, axis=1, dtype=f32)                 # [Bb, H] f32

    # ----- output MLP -----
    out_fc = mm(att.astype(cdt), ow_ref) + ob_ref[...]        # [Bb, H]  f32
    f1 = sig((mm(out_fc.astype(cdt), dw1o_ref) + mm(q, dw1q_ref)
              + db1_ref[...]).astype(cdt))                    # [Bb, H]  cdt
    f2 = sig((mm(f1, dw2_ref) + db2_ref[...]).astype(cdt))    # [Bb, H/2] cdt
    f3 = jnp.sum(f2 * dw3_ref[...], axis=-1, keepdims=True) + db3_ref[...]

    logits = f3 + ibias                                       # [Bb, 1]  f32
    p = sig(logits)
    # Lane-dense store: replicate the per-row prob across the 128 lanes
    # (wrapper reads column 0). Rows beyond the true batch are padding junk.
    probs_ref[...] = jnp.broadcast_to(p, (Bb, 128))

    # ----- per-row BCE from logits (stable log-sigmoid form, -100 clamp to
    #       match nn.BCELoss applied to sigmoid(logits)), reduced per block -----
    sp = jnp.maximum(logits, 0.0) + jnp.log(1.0 + jnp.exp(-jnp.abs(logits)))
    log_p = jnp.maximum(logits - sp, -100.0)       # log(sigmoid(z))
    log_1mp = jnp.maximum(-sp, -100.0)             # log(1 - sigmoid(z))
    row_loss = -(lbl * log_p + (1.0 - lbl) * log_1mp) * valid
    loss_ref[...] = jnp.broadcast_to(jnp.sum(row_loss), (1, 8, 128))


# ----------------------------------------------------------------------------
# Wrapper helpers.
# ----------------------------------------------------------------------------
def _round_up(x, m):
    return ((x + m - 1) // m) * m


def _tpu_vmem_capacity_bytes():
    try:
        info = pltpu.get_tpu_info()
        cap = getattr(info, "vmem_capacity_bytes", None)
        if cap:
            return int(cap)
    except Exception:
        pass
    return 64 * 1024 * 1024   # conservative default (v7x: 64 MiB per TensorCore)


def _pick_block_b(batch, seq, hidden, in_bytes, vmem_budget_bytes):
    """Batch block: multiple of 8, large enough to amortize per-step overhead,
    small enough that the double-buffered history block plus f32/bf16
    intermediates fit the VMEM budget, and capped so the grid keeps >=2 blocks
    (v7x has 2 TensorCores to split the 'parallel' batch axis across)."""
    def footprint(b):
        hist = 2 * b * seq * hidden * in_bytes              # his, double-buffered
        inter = b * seq * hidden * (4 + 2 * in_bytes)       # z(f32) + qhis + d1
        inter += b * seq * (hidden // 2) * (4 + in_bytes)   # d2 pre-act + act
        small = 4 * b * 128 * 4 + (2 << 20)                 # outputs, q, aux, weights
        return hist + inter + small

    bb = min(1024, _round_up(batch, 8))
    if batch > 8:    # keep >=2 grid blocks so multi-TC chips can split the batch
        bb = min(bb, _round_up((batch + 1) // 2, 8))
    while bb > 8 and footprint(bb) > vmem_budget_bytes:
        bb -= 8
    return bb


def _prepare_weights(params, compute_dtype):
    """Fold atten_fc1 and cast MXU operands to the compute dtype.
    No item/cate splitting: the kernel receives full-width [item||cate]
    embeddings, so every contraction is K=H (=80)."""
    H = params["ow"].shape[0]
    aw1 = params["aw1"]                 # [4H, H]; row blocks: [q | k | q-k | q*k]
    W_q, W_k, W_d, W_p = aw1[0:H], aw1[H:2 * H], aw1[2 * H:3 * H], aw1[3 * H:4 * H]
    dw1 = params["dw1"]
    cdt = compute_dtype

    mats = {
        "aq": W_q + W_d,                # multiplies q
        "ah": W_k - W_d,                # multiplies his
        "ap": W_p,                      # multiplies q*his
        "aw2": params["aw2"], "ow": params["ow"],
        "dw1o": dw1[:H], "dw1q": dw1[H:], "dw2": params["dw2"],
    }
    mats = {k: v.astype(cdt) for k, v in mats.items()}
    vecs = {k: params[k].astype(jnp.float32)
            for k in ("ab1", "ab2", "aw3", "ab3", "ob", "db1", "db2", "dw3", "db3")}

    return [mats["aq"], mats["ah"], mats["ap"], vecs["ab1"],
            mats["aw2"], vecs["ab2"], vecs["aw3"], vecs["ab3"],
            mats["ow"], vecs["ob"],
            mats["dw1o"], mats["dw1q"], vecs["db1"],
            mats["dw2"], vecs["db2"], vecs["dw3"], vecs["db3"]]


# ----------------------------------------------------------------------------
# Wrapper: embedding gathers in plain JAX + one gridded pallas_call.
# ----------------------------------------------------------------------------
@functools.partial(jax.jit, static_argnames=("compute_dtype",))
def model_forward(params, user_his, user_cate, target_item, target_cate, sl, label,
                  compute_dtype=jnp.bfloat16):
    item_emb = params["item_emb"]            # [item_count, H/2]
    cate_emb = params["cate_emb"]            # [cate_count, H/2]
    item_b = params["item_b"]                # [item_count, 1]

    B, T = user_his.shape
    H = 2 * item_emb.shape[1]
    cdt = compute_dtype
    in_bytes = jnp.dtype(cdt).itemsize

    # Generation-aware VMEM budgeting (v5e/v6e: 128 MiB, v7x: 64 MiB per TC).
    vmem_cap = _tpu_vmem_capacity_bytes()
    vmem_limit = min(vmem_cap * 3 // 4, 80 * 1024 * 1024)

    T_pad = _round_up(T, 8)                  # sublane-aligned history length
    bb = _pick_block_b(B, T_pad, H, in_bytes, vmem_limit // 2)
    B_pad = pl.cdiv(B, bb) * bb
    G = B_pad // bb
    pad_b, pad_t = B_pad - B, T_pad - T

    # Pad batch & history length; padded rows/positions are masked out.
    user_his_p = jnp.pad(user_his, ((0, pad_b), (0, pad_t)))
    user_cate_p = jnp.pad(user_cate, ((0, pad_b), (0, pad_t)))
    tgt_item_p = jnp.pad(target_item.reshape(B, 1), ((0, pad_b), (0, 0)))
    tgt_cate_p = jnp.pad(target_cate.reshape(B, 1), ((0, pad_b), (0, 0)))
    sl_p = jnp.pad(sl.reshape(B, 1).astype(jnp.int32), ((0, pad_b), (0, 0)))
    label_p = jnp.pad(label.reshape(B, 1).astype(jnp.float32), ((0, pad_b), (0, 0)))
    valid = (jnp.arange(B_pad) < B).astype(jnp.float32).reshape(B_pad, 1)

    # Embedding gathers (data-dependent -> XLA glue).  The item||cate concat is
    # done here (it fuses with the gathers), so the kernel sees full-width
    # embeddings and every contraction is K=H instead of K=H/2.
    # TODO(synk): move the gather into the kernel (VMEM-resident tables +
    # jnp.take) or use CompilerParams(allow_input_fusion=...) to drop the HBM
    # round-trip of his_emb, once in-kernel gather lowering is verified.
    i_emb = jnp.concatenate([item_emb[tgt_item_p[:, 0]],
                             cate_emb[tgt_cate_p[:, 0]]], axis=-1).astype(cdt)
    his_emb = jnp.concatenate([item_emb[user_his_p],
                               cate_emb[user_cate_p]], axis=-1).astype(cdt)
    ibias = item_b[tgt_item_p[:, 0]].astype(jnp.float32)             # [B_pad, 1]
    aux = jnp.concatenate([ibias, sl_p.astype(jnp.float32), label_p, valid], axis=1)

    data_in = [i_emb, his_emb, aux]
    weights = _prepare_weights(params, cdt)

    in_specs = [
        pl.BlockSpec((bb, H), lambda g: (g, 0)),
        pl.BlockSpec((bb, T_pad, H), lambda g: (g, 0, 0)),
        pl.BlockSpec((bb, 4), lambda g: (g, 0)),
    ] + [pl.BlockSpec(w.shape, lambda g: (0, 0)) for w in weights]

    grid_spec = pltpu.PrefetchScalarGridSpec(
        num_scalar_prefetch=0,
        grid=(G,),
        in_specs=in_specs,
        out_specs=(pl.BlockSpec((bb, 128), lambda g: (g, 0)),
                   pl.BlockSpec((1, 8, 128), lambda g: (g, 0, 0))),
    )

    probs_out, loss_part = pl.pallas_call(
        din_kernel,
        out_shape=(jax.ShapeDtypeStruct((B_pad, 128), jnp.float32),
                   jax.ShapeDtypeStruct((G, 8, 128), jnp.float32)),
        grid_spec=grid_spec,
        compiler_params=pltpu.CompilerParams(
            dimension_semantics=("parallel",),      # batch blocks -> v7x's 2 TCs
            vmem_limit_bytes=int(vmem_limit)),
    )(*data_in, *weights)

    loss = jnp.sum(loss_part[:, 0, 0]) / B          # mean over the true batch
    probs = probs_out[:B, 0]                        # rows >= B are padding junk
    return loss, probs


# ----------------------------------------------------------------------------
# Pure-JAX reference (mirrors the PyTorch forward) for a sanity check.
# ----------------------------------------------------------------------------
def reference_forward(params, user_his, user_cate, target_item, target_cate, sl, label):
    item_emb, cate_emb, item_b = params["item_emb"], params["cate_emb"], params["item_b"]
    t_item = item_emb[target_item[:, 0]]
    t_cate = cate_emb[target_cate[:, 0]]
    i_emb = jnp.concatenate([t_item, t_cate], axis=-1)
    his_emb = jnp.concatenate([item_emb[user_his], cate_emb[user_cate]], axis=-1)
    ibias = item_b[target_item[:, 0]]

    B, T, H = his_emb.shape
    sig = jax.nn.sigmoid
    q = jnp.broadcast_to(i_emb[:, None, :], (B, T, H))
    concat_vec = jnp.concatenate([q, his_emb, q - his_emb, q * his_emb], axis=-1)
    d1 = sig(concat_vec @ params["aw1"] + params["ab1"][0])
    d2 = sig(d1 @ params["aw2"] + params["ab2"][0])
    d3 = sig(jnp.sum(d2 * params["aw3"][0], axis=-1, keepdims=True) + params["ab3"][0])
    mask = (jnp.arange(T)[None, :, None] < sl[:, :, None]).astype(jnp.float32)
    att = jnp.sum(d3 * mask * his_emb, axis=1)
    out_fc = att @ params["ow"] + params["ob"][0]
    emb_cat = jnp.concatenate([out_fc, i_emb], axis=1)
    f1 = sig(emb_cat @ params["dw1"] + params["db1"][0])
    f2 = sig(f1 @ params["dw2"] + params["db2"][0])
    f3 = jnp.sum(f2 * params["dw3"][0], axis=-1, keepdims=True) + params["db3"][0]
    p = sig(f3 + ibias)[:, 0]
    lbl = label.astype(jnp.float32)
    logp = jnp.maximum(jnp.log(p), -100.0)
    log1mp = jnp.maximum(jnp.log(1.0 - p), -100.0)
    loss = -jnp.mean(lbl * logp + (1.0 - lbl) * log1mp)
    return loss, p


def init_params(key, item_count=ITEM_COUNT, cate_count=CATE_COUNT, hidden=HIDDEN_UNITS):
    keys = jax.random.split(key, 20)
    h2 = hidden // 2

    def dense(kw, kb, n_in, n_out):
        bound = 1.0 / (n_in ** 0.5)
        w = jax.random.uniform(kw, (n_in, n_out), jnp.float32, -bound, bound)
        b = jax.random.uniform(kb, (1, n_out), jnp.float32, -bound, bound)
        return w, b

    params = {}
    params["item_emb"] = jax.random.normal(keys[0], (item_count, h2), jnp.float32) * 0.1
    params["cate_emb"] = jax.random.normal(keys[1], (cate_count, h2), jnp.float32) * 0.1
    params["item_b"] = jax.random.normal(keys[2], (item_count, 1), jnp.float32) * 0.1
    params["aw1"], params["ab1"] = dense(keys[3], keys[4], 4 * hidden, hidden)
    params["aw2"], params["ab2"] = dense(keys[5], keys[6], hidden, h2)
    # fc3 weights kept as a single [1, in] row (single output unit).
    w3, b3 = dense(keys[7], keys[8], h2, 1)
    params["aw3"], params["ab3"] = w3.T, b3
    params["ow"], params["ob"] = dense(keys[9], keys[10], hidden, hidden)
    params["dw1"], params["db1"] = dense(keys[11], keys[12], 2 * hidden, hidden)
    params["dw2"], params["db2"] = dense(keys[13], keys[14], hidden, h2)
    w3d, b3d = dense(keys[15], keys[16], h2, 1)
    params["dw3"], params["db3"] = w3d.T, b3d
    return params


if __name__ == "__main__":
    B, T = 2, 8
    key = jax.random.PRNGKey(0)
    kp, k1, k2, k3, k4, k5, k6 = jax.random.split(key, 7)

    params = init_params(kp)

    user_his = jax.random.randint(k1, (B, T), 0, ITEM_COUNT, dtype=jnp.int32)
    user_cate = jax.random.randint(k2, (B, T), 0, CATE_COUNT, dtype=jnp.int32)
    target_item = jax.random.randint(k3, (B, 1), 0, ITEM_COUNT, dtype=jnp.int32)
    target_cate = jax.random.randint(k4, (B, 1), 0, CATE_COUNT, dtype=jnp.int32)
    sl = jax.random.randint(k5, (B, 1), 1, T + 1, dtype=jnp.int32)
    label = jax.random.bernoulli(k6, 0.5, (B,)).astype(jnp.float32)

    ref_loss, ref_probs = reference_forward(params, user_his, user_cate,
                                            target_item, target_cate, sl, label)

    # bf16 MXU path (production configuration).
    loss, probs = model_forward(params, user_his, user_cate,
                                target_item, target_cate, sl, label,
                                compute_dtype=jnp.bfloat16)
    jax.block_until_ready((loss, probs))
    assert jnp.allclose(loss, ref_loss, rtol=5e-2, atol=5e-2), (loss, ref_loss)
    assert jnp.allclose(probs, ref_probs, rtol=5e-2, atol=5e-2), (probs, ref_probs)

    # f32 path: tight check of the folded-weight algebra and loss/mask handling.
    loss32, probs32 = model_forward(params, user_his, user_cate,
                                    target_item, target_cate, sl, label,
                                    compute_dtype=jnp.float32)
    jax.block_until_ready((loss32, probs32))
    assert jnp.allclose(loss32, ref_loss, rtol=1e-4, atol=1e-4), (loss32, ref_loss)
    assert jnp.allclose(probs32, ref_probs, rtol=1e-4, atol=1e-4), (probs32, ref_probs)

    print("KERNEL_OK")
</pallas_src>

<mosaic_0001>
module attributes {stable_mosaic.version = 11 : i64} {
  func.func @din_kernel(%arg0: i32, %arg1: memref<8x80xbf16, #tpu.memory_space<vmem>>, %arg2: memref<8x8x80xbf16, #tpu.memory_space<vmem>>, %arg3: memref<8x4xf32, #tpu.memory_space<vmem>>, %arg4: memref<80x80xbf16, #tpu.memory_space<vmem>>, %arg5: memref<80x80xbf16, #tpu.memory_space<vmem>>, %arg6: memref<80x80xbf16, #tpu.memory_space<vmem>>, %arg7: memref<1x80xf32, #tpu.memory_space<vmem>>, %arg8: memref<80x40xbf16, #tpu.memory_space<vmem>>, %arg9: memref<1x40xf32, #tpu.memory_space<vmem>>, %arg10: memref<1x40xf32, #tpu.memory_space<vmem>>, %arg11: memref<1x1xf32, #tpu.memory_space<vmem>>, %arg12: memref<80x80xbf16, #tpu.memory_space<vmem>>, %arg13: memref<1x80xf32, #tpu.memory_space<vmem>>, %arg14: memref<80x80xbf16, #tpu.memory_space<vmem>>, %arg15: memref<80x80xbf16, #tpu.memory_space<vmem>>, %arg16: memref<1x80xf32, #tpu.memory_space<vmem>>, %arg17: memref<80x40xbf16, #tpu.memory_space<vmem>>, %arg18: memref<1x40xf32, #tpu.memory_space<vmem>>, %arg19: memref<1x40xf32, #tpu.memory_space<vmem>>, %arg20: memref<1x1xf32, #tpu.memory_space<vmem>>, %arg21: memref<8x128xf32, #tpu.memory_space<vmem>>, %arg22: memref<1x8x128xf32, #tpu.memory_space<vmem>>) attributes {dimension_semantics = [#tpu.dimension_semantics<parallel>], iteration_bounds = array<i64: 1>, scalar_prefetch = 0 : i64, scratch_operands = 0 : i64, tpu.core_type = #tpu.core_type<tc>, window_params = [{transform_indices = @transform_0, window_bounds = array<i64: 8, 80>}, {transform_indices = @transform_1, window_bounds = array<i64: 8, 8, 80>}, {transform_indices = @transform_2, window_bounds = array<i64: 8, 4>}, {pipeline_mode = #tpu.pipeline_mode<synchronous>, transform_indices = @transform_3, window_bounds = array<i64: 80, 80>}, {pipeline_mode = #tpu.pipeline_mode<synchronous>, transform_indices = @transform_4, window_bounds = array<i64: 80, 80>}, {pipeline_mode = #tpu.pipeline_mode<synchronous>, transform_indices = @transform_5, window_bounds = array<i64: 80, 80>}, {pipeline_mode = #tpu.pipeline_mode<synchronous>, transform_indices = @transform_6, window_bounds = array<i64: 1, 80>}, {pipeline_mode = #tpu.pipeline_mode<synchronous>, transform_indices = @transform_7, window_bounds = array<i64: 80, 40>}, {pipeline_mode = #tpu.pipeline_mode<synchronous>, transform_indices = @transform_8, window_bounds = array<i64: 1, 40>}, {pipeline_mode = #tpu.pipeline_mode<synchronous>, transform_indices = @transform_9, window_bounds = array<i64: 1, 40>}, {pipeline_mode = #tpu.pipeline_mode<synchronous>, transform_indices = @transform_10, window_bounds = array<i64: 1, 1>}, {pipeline_mode = #tpu.pipeline_mode<synchronous>, transform_indices = @transform_11, window_bounds = array<i64: 80, 80>}, {pipeline_mode = #tpu.pipeline_mode<synchronous>, transform_indices = @transform_12, window_bounds = array<i64: 1, 80>}, {pipeline_mode = #tpu.pipeline_mode<synchronous>, transform_indices = @transform_13, window_bounds = array<i64: 80, 80>}, {pipeline_mode = #tpu.pipeline_mode<synchronous>, transform_indices = @transform_14, window_bounds = array<i64: 80, 80>}, {pipeline_mode = #tpu.pipeline_mode<synchronous>, transform_indices = @transform_15, window_bounds = array<i64: 1, 80>}, {pipeline_mode = #tpu.pipeline_mode<synchronous>, transform_indices = @transform_16, window_bounds = array<i64: 80, 40>}, {pipeline_mode = #tpu.pipeline_mode<synchronous>, transform_indices = @transform_17, window_bounds = array<i64: 1, 40>}, {pipeline_mode = #tpu.pipeline_mode<synchronous>, transform_indices = @transform_18, window_bounds = array<i64: 1, 40>}, {pipeline_mode = #tpu.pipeline_mode<synchronous>, transform_indices = @transform_19, window_bounds = array<i64: 1, 1>}, {transform_indices = @transform_20, window_bounds = array<i64: 8, 128>}, {transform_indices = @transform_21, window_bounds = array<i64: 1, 8, 128>}]} {
    %c0 = arith.constant 0 : index
    %c0_0 = arith.constant 0 : index
    %0 = vector.load %arg1[%c0, %c0_0] : memref<8x80xbf16, #tpu.memory_space<vmem>>, vector<8x80xbf16>
    %c0_1 = arith.constant 0 : index
    %c0_2 = arith.constant 0 : index
    %c0_3 = arith.constant 0 : index
    %1 = vector.load %arg2[%c0_1, %c0_2, %c0_3] : memref<8x8x80xbf16, #tpu.memory_space<vmem>>, vector<8x8x80xbf16>
    %c0_4 = arith.constant 0 : index
    %c0_5 = arith.constant 0 : index
    %2 = vector.load %arg3[%c0_4, %c0_5] : memref<8x4xf32, #tpu.memory_space<vmem>>, vector<8x4xf32>
    %3 = vector.extract_strided_slice %2 {offsets = [0, 0], sizes = [8, 1], strides = [1, 1]} : vector<8x4xf32> to vector<8x1xf32>
    %4 = vector.extract_strided_slice %2 {offsets = [0, 1], sizes = [8, 1], strides = [1, 1]} : vector<8x4xf32> to vector<8x1xf32>
    %5 = arith.fptosi %4 : vector<8x1xf32> to vector<8x1xi32>
    %6 = vector.extract_strided_slice %2 {offsets = [0, 2], sizes = [8, 1], strides = [1, 1]} : vector<8x4xf32> to vector<8x1xf32>
    %7 = vector.extract_strided_slice %2 {offsets = [0, 3], sizes = [8, 1], strides = [1, 1]} : vector<8x4xf32> to vector<8x1xf32>
    %c0_6 = arith.constant 0 : index
    %c0_7 = arith.constant 0 : index
    %8 = vector.load %arg4[%c0_6, %c0_7] : memref<80x80xbf16, #tpu.memory_space<vmem>>, vector<80x80xbf16>
    %cst = arith.constant dense<0.000000e+00> : vector<8x80xf32>
    %9 = tpu.matmul %0, %8, %cst {dimension_numbers = #tpu.dot_dimension_numbers<[1], [0], [0], [1], [0, 0, 1, 1], [], []>} : vector<8x80xbf16>, vector<80x80xbf16>, vector<8x80xf32> -> vector<8x80xf32>
    %c0_8 = arith.constant 0 : index
    %c0_9 = arith.constant 0 : index
    %10 = vector.load %arg7[%c0_8, %c0_9] : memref<1x80xf32, #tpu.memory_space<vmem>>, vector<1x80xf32>
    %11 = vector.broadcast %10 : vector<1x80xf32> to vector<8x80xf32>
    %12 = arith.addf %9, %11 : vector<8x80xf32>
    %13 = vector.shape_cast %0 : vector<8x80xbf16> to vector<8x1x80xbf16>
    %14 = vector.broadcast %13 : vector<8x1x80xbf16> to vector<8x8x80xbf16>
    %15 = arith.mulf %14, %1 : vector<8x8x80xbf16>
    %16 = vector.shape_cast %1 : vector<8x8x80xbf16> to vector<64x80xbf16>
    %17 = vector.shape_cast %15 : vector<8x8x80xbf16> to vector<64x80xbf16>
    %c0_10 = arith.constant 0 : index
    %c0_11 = arith.constant 0 : index
    %18 = vector.load %arg5[%c0_10, %c0_11] : memref<80x80xbf16, #tpu.memory_space<vmem>>, vector<80x80xbf16>
    %cst_12 = arith.constant dense<0.000000e+00> : vector<64x80xf32>
    %19 = tpu.matmul %16, %18, %cst_12 {dimension_numbers = #tpu.dot_dimension_numbers<[1], [0], [0], [1], [0, 0, 1, 1], [], []>} : vector<64x80xbf16>, vector<80x80xbf16>, vector<64x80xf32> -> vector<64x80xf32>
    %c0_13 = arith.constant 0 : index
    %c0_14 = arith.constant 0 : index
    %20 = vector.load %arg6[%c0_13, %c0_14] : memref<80x80xbf16, #tpu.memory_space<vmem>>, vector<80x80xbf16>
    %cst_15 = arith.constant dense<0.000000e+00> : vector<64x80xf32>
    %21 = tpu.matmul %17, %20, %cst_15 {dimension_numbers = #tpu.dot_dimension_numbers<[1], [0], [0], [1], [0, 0, 1, 1], [], []>} : vector<64x80xbf16>, vector<80x80xbf16>, vector<64x80xf32> -> vector<64x80xf32>
    %22 = arith.addf %19, %21 : vector<64x80xf32>
    %23 = vector.shape_cast %22 : vector<64x80xf32> to vector<8x8x80xf32>
    %24 = vector.shape_cast %12 : vector<8x80xf32> to vector<8x1x80xf32>
    %25 = vector.broadcast %24 : vector<8x1x80xf32> to vector<8x8x80xf32>
    %26 = arith.addf %23, %25 : vector<8x8x80xf32>
    %27 = arith.truncf %26 : vector<8x8x80xf32> to vector<8x8x80xbf16>
    %28 = arith.negf %27 : vector<8x8x80xbf16>
    %29 = math.exp %28 : vector<8x8x80xbf16>
    %cst_16 = arith.constant 1.000000e+00 : bf16
    %30 = vector.broadcast %cst_16 : bf16 to vector<8x8x80xbf16>
    %31 = arith.addf %30, %29 : vector<8x8x80xbf16>
    %32 = arith.divf %30, %31 : vector<8x8x80xbf16>
    %33 = vector.shape_cast %32 : vector<8x8x80xbf16> to vector<64x80xbf16>
    %c0_17 = arith.constant 0 : index
    %c0_18 = arith.constant 0 : index
    %34 = vector.load %arg8[%c0_17, %c0_18] : memref<80x40xbf16, #tpu.memory_space<vmem>>, vector<80x40xbf16>
    %cst_19 = arith.constant dense<0.000000e+00> : vector<64x40xf32>
    %35 = tpu.matmul %33, %34, %cst_19 {dimension_numbers = #tpu.dot_dimension_numbers<[1], [0], [0], [1], [0, 0, 1, 1], [], []>} : vector<64x80xbf16>, vector<80x40xbf16>, vector<64x40xf32> -> vector<64x40xf32>
    %c0_20 = arith.constant 0 : index
    %c0_21 = arith.constant 0 : index
    %36 = vector.load %arg9[%c0_20, %c0_21] : memref<1x40xf32, #tpu.memory_space<vmem>>, vector<1x40xf32>
    %37 = vector.broadcast %36 : vector<1x40xf32> to vector<64x40xf32>
    %38 = arith.addf %35, %37 : vector<64x40xf32>
    %39 = arith.truncf %38 : vector<64x40xf32> to vector<64x40xbf16>
    %40 = arith.negf %39 : vector<64x40xbf16>
    %41 = math.exp %40 : vector<64x40xbf16>
    %cst_22 = arith.constant 1.000000e+00 : bf16
    %42 = vector.broadcast %cst_22 : bf16 to vector<64x40xbf16>
    %43 = arith.addf %42, %41 : vector<64x40xbf16>
    %44 = arith.divf %42, %43 : vector<64x40xbf16>
    %c0_23 = arith.constant 0 : index
    %c0_24 = arith.constant 0 : index
    %45 = vector.load %arg10[%c0_23, %c0_24] : memref<1x40xf32, #tpu.memory_space<vmem>>, vector<1x40xf32>
    %46 = arith.extf %44 : vector<64x40xbf16> to vector<64x40xf32>
    %47 = vector.broadcast %45 : vector<1x40xf32> to vector<64x40xf32>
    %48 = arith.mulf %46, %47 : vector<64x40xf32>
    %cst_25 = arith.constant dense<0.000000e+00> : vector<64xf32>
    %49 = vector.multi_reduction <add>, %48, %cst_25 [1] : vector<64x40xf32> to vector<64xf32>
    %50 = vector.shape_cast %49 : vector<64xf32> to vector<64x1xf32>
    %c0_26 = arith.constant 0 : index
    %c0_27 = arith.constant 0 : index
    %51 = vector.load %arg11[%c0_26, %c0_27] : memref<1x1xf32, #tpu.memory_space<vmem>>, vector<1x1xf32>
    %52 = vector.broadcast %51 : vector<1x1xf32> to vector<64x1xf32>
    %53 = arith.addf %50, %52 : vector<64x1xf32>
    %54 = arith.negf %53 : vector<64x1xf32>
    %55 = math.exp %54 : vector<64x1xf32>
    %cst_28 = arith.constant 1.000000e+00 : f32
    %56 = vector.broadcast %cst_28 : f32 to vector<64x1xf32>
    %57 = arith.addf %56, %55 : vector<64x1xf32>
    %58 = arith.divf %56, %57 : vector<64x1xf32>
    %59 = vector.shape_cast %58 : vector<64x1xf32> to vector<8x8x1xf32>
    %60 = tpu.iota {dimensions = array<i32: 1>} : vector<8x8x1xi32>
    %61 = vector.shape_cast %5 : vector<8x1xi32> to vector<8x1x1xi32>
    %62 = vector.broadcast %61 : vector<8x1x1xi32> to vector<8x8x1xi32>
    %63 = arith.cmpi slt, %60, %62 : vector<8x8x1xi32>
    %cst_29 = arith.constant 0.000000e+00 : f32
    %64 = vector.broadcast %cst_29 : f32 to vector<8x8x1xf32>
    %65 = arith.select %63, %59, %64 : vector<8x8x1xi1>, vector<8x8x1xf32>
    %66 = arith.truncf %65 : vector<8x8x1xf32> to vector<8x8x1xbf16>
    %67 = vector.broadcast %66 : vector<8x8x1xbf16> to vector<8x8x80xbf16>
    %68 = arith.mulf %67, %1 : vector<8x8x80xbf16>
    %69 = arith.extf %68 : vector<8x8x80xbf16> to vector<8x8x80xf32>
    %cst_30 = arith.constant dense<0.000000e+00> : vector<8x80xf32>
    %70 = vector.multi_reduction <add>, %69, %cst_30 [1] : vector<8x8x80xf32> to vector<8x80xf32>
    %71 = arith.truncf %70 : vector<8x80xf32> to vector<8x80xbf16>
    %c0_31 = arith.constant 0 : index
    %c0_32 = arith.constant 0 : index
    %72 = vector.load %arg12[%c0_31, %c0_32] : memref<80x80xbf16, #tpu.memory_space<vmem>>, vector<80x80xbf16>
    %cst_33 = arith.constant dense<0.000000e+00> : vector<8x80xf32>
    %73 = tpu.matmul %71, %72, %cst_33 {dimension_numbers = #tpu.dot_dimension_numbers<[1], [0], [0], [1], [0, 0, 1, 1], [], []>} : vector<8x80xbf16>, vector<80x80xbf16>, vector<8x80xf32> -> vector<8x80xf32>
    %c0_34 = arith.constant 0 : index
    %c0_35 = arith.constant 0 : index
    %74 = vector.load %arg13[%c0_34, %c0_35] : memref<1x80xf32, #tpu.memory_space<vmem>>, vector<1x80xf32>
    %75 = vector.broadcast %74 : vector<1x80xf32> to vector<8x80xf32>
    %76 = arith.addf %73, %75 : vector<8x80xf32>
    %77 = arith.truncf %76 : vector<8x80xf32> to vector<8x80xbf16>
    %c0_36 = arith.constant 0 : index
    %c0_37 = arith.constant 0 : index
    %78 = vector.load %arg14[%c0_36, %c0_37] : memref<80x80xbf16, #tpu.memory_space<vmem>>, vector<80x80xbf16>
    %cst_38 = arith.constant dense<0.000000e+00> : vector<8x80xf32>
    %79 = tpu.matmul %77, %78, %cst_38 {dimension_numbers = #tpu.dot_dimension_numbers<[1], [0], [0], [1], [0, 0, 1, 1], [], []>} : vector<8x80xbf16>, vector<80x80xbf16>, vector<8x80xf32> -> vector<8x80xf32>
    %c0_39 = arith.constant 0 : index
    %c0_40 = arith.constant 0 : index
    %80 = vector.load %arg15[%c0_39, %c0_40] : memref<80x80xbf16, #tpu.memory_space<vmem>>, vector<80x80xbf16>
    %cst_41 = arith.constant dense<0.000000e+00> : vector<8x80xf32>
    %81 = tpu.matmul %0, %80, %cst_41 {dimension_numbers = #tpu.dot_dimension_numbers<[1], [0], [0], [1], [0, 0, 1, 1], [], []>} : vector<8x80xbf16>, vector<80x80xbf16>, vector<8x80xf32> -> vector<8x80xf32>
    %82 = arith.addf %79, %81 : vector<8x80xf32>
    %c0_42 = arith.constant 0 : index
    %c0_43 = arith.constant 0 : index
    %83 = vector.load %arg16[%c0_42, %c0_43] : memref<1x80xf32, #tpu.memory_space<vmem>>, vector<1x80xf32>
    %84 = vector.broadcast %83 : vector<1x80xf32> to vector<8x80xf32>
    %85 = arith.addf %82, %84 : vector<8x80xf32>
    %86 = arith.truncf %85 : vector<8x80xf32> to vector<8x80xbf16>
    %87 = arith.negf %86 : vector<8x80xbf16>
    %88 = math.exp %87 : vector<8x80xbf16>
    %cst_44 = arith.constant 1.000000e+00 : bf16
    %89 = vector.broadcast %cst_44 : bf16 to vector<8x80xbf16>
    %90 = arith.addf %89, %88 : vector<8x80xbf16>
    %91 = arith.divf %89, %90 : vector<8x80xbf16>
    %c0_45 = arith.constant 0 : index
    %c0_46 = arith.constant 0 : index
    %92 = vector.load %arg17[%c0_45, %c0_46] : memref<80x40xbf16, #tpu.memory_space<vmem>>, vector<80x40xbf16>
    %cst_47 = arith.constant dense<0.000000e+00> : vector<8x40xf32>
    %93 = tpu.matmul %91, %92, %cst_47 {dimension_numbers = #tpu.dot_dimension_numbers<[1], [0], [0], [1], [0, 0, 1, 1], [], []>} : vector<8x80xbf16>, vector<80x40xbf16>, vector<8x40xf32> -> vector<8x40xf32>
    %c0_48 = arith.constant 0 : index
    %c0_49 = arith.constant 0 : index
    %94 = vector.load %arg18[%c0_48, %c0_49] : memref<1x40xf32, #tpu.memory_space<vmem>>, vector<1x40xf32>
    %95 = vector.broadcast %94 : vector<1x40xf32> to vector<8x40xf32>
    %96 = arith.addf %93, %95 : vector<8x40xf32>
    %97 = arith.truncf %96 : vector<8x40xf32> to vector<8x40xbf16>
    %98 = arith.negf %97 : vector<8x40xbf16>
    %99 = math.exp %98 : vector<8x40xbf16>
    %cst_50 = arith.constant 1.000000e+00 : bf16
    %100 = vector.broadcast %cst_50 : bf16 to vector<8x40xbf16>
    %101 = arith.addf %100, %99 : vector<8x40xbf16>
    %102 = arith.divf %100, %101 : vector<8x40xbf16>
    %c0_51 = arith.constant 0 : index
    %c0_52 = arith.constant 0 : index
    %103 = vector.load %arg19[%c0_51, %c0_52] : memref<1x40xf32, #tpu.memory_space<vmem>>, vector<1x40xf32>
    %104 = arith.extf %102 : vector<8x40xbf16> to vector<8x40xf32>
    %105 = vector.broadcast %103 : vector<1x40xf32> to vector<8x40xf32>
    %106 = arith.mulf %104, %105 : vector<8x40xf32>
    %cst_53 = arith.constant dense<0.000000e+00> : vector<8xf32>
    %107 = vector.multi_reduction <add>, %106, %cst_53 [1] : vector<8x40xf32> to vector<8xf32>
    %108 = vector.shape_cast %107 : vector<8xf32> to vector<8x1xf32>
    %c0_54 = arith.constant 0 : index
    %c0_55 = arith.constant 0 : index
    %109 = vector.load %arg20[%c0_54, %c0_55] : memref<1x1xf32, #tpu.memory_space<vmem>>, vector<1x1xf32>
    %110 = vector.broadcast %109 : vector<1x1xf32> to vector<8x1xf32>
    %111 = arith.addf %108, %110 : vector<8x1xf32>
    %112 = arith.addf %111, %3 : vector<8x1xf32>
    %113 = arith.negf %112 : vector<8x1xf32>
    %114 = math.exp %113 : vector<8x1xf32>
    %cst_56 = arith.constant 1.000000e+00 : f32
    %115 = vector.broadcast %cst_56 : f32 to vector<8x1xf32>
    %116 = arith.addf %115, %114 : vector<8x1xf32>
    %117 = arith.divf %115, %116 : vector<8x1xf32>
    %118 = vector.shape_cast %117 : vector<8x1xf32> to vector<8x1xf32>
    %119 = vector.broadcast %118 : vector<8x1xf32> to vector<8x128xf32>
    %c0_57 = arith.constant 0 : index
    %c0_58 = arith.constant 0 : index
    %120 = vector.load %arg21[%c0_57, %c0_58] : memref<8x128xf32, #tpu.memory_space<vmem>>, vector<8x128xf32>
    tpu.vector_store %arg21[%c0_57, %c0_58], %119 {strides = array<i32>} : memref<8x128xf32, #tpu.memory_space<vmem>>, vector<8x128xf32>,
    %cst_59 = arith.constant 0.000000e+00 : f32
    %121 = vector.broadcast %cst_59 : f32 to vector<8x1xf32>
    %122 = arith.maximumf %112, %121 : vector<8x1xf32>
    %123 = math.absf %112 : vector<8x1xf32>
    %cst_60 = arith.constant 0.000000e+00 : f32
    %124 = vector.broadcast %cst_60 : f32 to vector<8x1xf32>
    %125 = arith.subf %124, %123 : vector<8x1xf32>
    %126 = math.exp %125 : vector<8x1xf32>
    %cst_61 = arith.constant 1.000000e+00 : f32
    %127 = vector.broadcast %cst_61 : f32 to vector<8x1xf32>
    %128 = arith.addf %127, %126 : vector<8x1xf32>
    %129 = math.log %128 : vector<8x1xf32>
    %130 = arith.addf %122, %129 : vector<8x1xf32>
    %131 = arith.subf %112, %130 : vector<8x1xf32>
    %cst_62 = arith.constant -1.000000e+02 : f32
    %132 = vector.broadcast %cst_62 : f32 to vector<8x1xf32>
    %133 = arith.maximumf %131, %132 : vector<8x1xf32>
    %cst_63 = arith.constant 0.000000e+00 : f32
    %134 = vector.broadcast %cst_63 : f32 to vector<8x1xf32>
    %135 = arith.subf %134, %130 : vector<8x1xf32>
    %cst_64 = arith.constant -1.000000e+02 : f32
    %136 = vector.broadcast %cst_64 : f32 to vector<8x1xf32>
    %137 = arith.maximumf %135, %136 : vector<8x1xf32>
    %138 = arith.mulf %6, %133 : vector<8x1xf32>
    %cst_65 = arith.constant 1.000000e+00 : f32
    %139 = vector.broadcast %cst_65 : f32 to vector<8x1xf32>
    %140 = arith.subf %139, %6 : vector<8x1xf32>
    %141 = arith.mulf %140, %137 : vector<8x1xf32>
    %142 = arith.addf %138, %141 : vector<8x1xf32>
    %cst_66 = arith.constant 0.000000e+00 : f32
    %143 = vector.broadcast %cst_66 : f32 to vector<8x1xf32>
    %144 = arith.subf %143, %142 : vector<8x1xf32>
    %145 = arith.mulf %144, %7 : vector<8x1xf32>
    %146 = vector.shape_cast %145 : vector<8x1xf32> to vector<1x8x1xf32>
    %cst_67 = arith.constant dense<0.000000e+00> : vector<1xf32>
    %147 = vector.multi_reduction <add>, %146, %cst_67 [1, 2] : vector<1x8x1xf32> to vector<1xf32>
    %148 = vector.shape_cast %147 : vector<1xf32> to vector<1x1x1xf32>
    %149 = vector.extract %148[0, 0, 0] : f32 from vector<1x1x1xf32>
    %150 = vector.broadcast %149 : f32 to vector<1x8x128xf32>
    %c0_68 = arith.constant 0 : index
    %c0_69 = arith.constant 0 : index
    %c0_70 = arith.constant 0 : index
    %151 = vector.load %arg22[%c0_68, %c0_69, %c0_70] : memref<1x8x128xf32, #tpu.memory_space<vmem>>, vector<1x8x128xf32>
    tpu.vector_store %arg22[%c0_68, %c0_69, %c0_70], %150 {strides = array<i32>} : memref<1x8x128xf32, #tpu.memory_space<vmem>>, vector<1x8x128xf32>,
    return
  }
  func.func @transform_0(%arg0: i32) -> (i32, i32) {
    %c0_i32 = arith.constant 0 : i32
    %c0_i32_0 = arith.constant 0 : i32
    return %arg0, %c0_i32 : i32, i32
  }
  func.func @transform_1(%arg0: i32) -> (i32, i32, i32) {
    %c0_i32 = arith.constant 0 : i32
    %c0_i32_0 = arith.constant 0 : i32
    %c0_i32_1 = arith.constant 0 : i32
    return %arg0, %c0_i32, %c0_i32_0 : i32, i32, i32
  }
  func.func @transform_2(%arg0: i32) -> (i32, i32) {
    %c0_i32 = arith.constant 0 : i32
    %c0_i32_0 = arith.constant 0 : i32
    return %arg0, %c0_i32 : i32, i32
  }
  func.func @transform_3(%arg0: i32) -> (i32, i32) {
    %c0_i32 = arith.constant 0 : i32
    %c0_i32_0 = arith.constant 0 : i32
    %c0_i32_1 = arith.constant 0 : i32
    return %c0_i32, %c0_i32_0 : i32, i32
  }
  func.func @transform_4(%arg0: i32) -> (i32, i32) {
    %c0_i32 = arith.constant 0 : i32
    %c0_i32_0 = arith.constant 0 : i32
    %c0_i32_1 = arith.constant 0 : i32
    return %c0_i32, %c0_i32_0 : i32, i32
  }
  func.func @transform_5(%arg0: i32) -> (i32, i32) {
    %c0_i32 = arith.constant 0 : i32
    %c0_i32_0 = arith.constant 0 : i32
    %c0_i32_1 = arith.constant 0 : i32
    return %c0_i32, %c0_i32_0 : i32, i32
  }
  func.func @transform_6(%arg0: i32) -> (i32, i32) {
    %c0_i32 = arith.constant 0 : i32
    %c0_i32_0 = arith.constant 0 : i32
    %c0_i32_1 = arith.constant 0 : i32
    return %c0_i32, %c0_i32_0 : i32, i32
  }
  func.func @transform_7(%arg0: i32) -> (i32, i32) {
    %c0_i32 = arith.constant 0 : i32
    %c0_i32_0 = arith.constant 0 : i32
    %c0_i32_1 = arith.constant 0 : i32
    return %c0_i32, %c0_i32_0 : i32, i32
  }
  func.func @transform_8(%arg0: i32) -> (i32, i32) {
    %c0_i32 = arith.constant 0 : i32
    %c0_i32_0 = arith.constant 0 : i32
    %c0_i32_1 = arith.constant 0 : i32
    return %c0_i32, %c0_i32_0 : i32, i32
  }
  func.func @transform_9(%arg0: i32) -> (i32, i32) {
    %c0_i32 = arith.constant 0 : i32
    %c0_i32_0 = arith.constant 0 : i32
    %c0_i32_1 = arith.constant 0 : i32
    return %c0_i32, %c0_i32_0 : i32, i32
  }
  func.func @transform_10(%arg0: i32) -> (i32, i32) {
    %c0_i32 = arith.constant 0 : i32
    %c0_i32_0 = arith.constant 0 : i32
    %c0_i32_1 = arith.constant 0 : i32
    return %c0_i32, %c0_i32_0 : i32, i32
  }
  func.func @transform_11(%arg0: i32) -> (i32, i32) {
    %c0_i32 = arith.constant 0 : i32
    %c0_i32_0 = arith.constant 0 : i32
    %c0_i32_1 = arith.constant 0 : i32
    return %c0_i32, %c0_i32_0 : i32, i32
  }
  func.func @transform_12(%arg0: i32) -> (i32, i32) {
    %c0_i32 = arith.constant 0 : i32
    %c0_i32_0 = arith.constant 0 : i32
    %c0_i32_1 = arith.constant 0 : i32
    return %c0_i32, %c0_i32_0 : i32, i32
  }
  func.func @transform_13(%arg0: i32) -> (i32, i32) {
    %c0_i32 = arith.constant 0 : i32
    %c0_i32_0 = arith.constant 0 : i32
    %c0_i32_1 = arith.constant 0 : i32
    return %c0_i32, %c0_i32_0 : i32, i32
  }
  func.func @transform_14(%arg0: i32) -> (i32, i32) {
    %c0_i32 = arith.constant 0 : i32
    %c0_i32_0 = arith.constant 0 : i32
    %c0_i32_1 = arith.constant 0 : i32
    return %c0_i32, %c0_i32_0 : i32, i32
  }
  func.func @transform_15(%arg0: i32) -> (i32, i32) {
    %c0_i32 = arith.constant 0 : i32
    %c0_i32_0 = arith.constant 0 : i32
    %c0_i32_1 = arith.constant 0 : i32
    return %c0_i32, %c0_i32_0 : i32, i32
  }
  func.func @transform_16(%arg0: i32) -> (i32, i32) {
    %c0_i32 = arith.constant 0 : i32
    %c0_i32_0 = arith.constant 0 : i32
    %c0_i32_1 = arith.constant 0 : i32
    return %c0_i32, %c0_i32_0 : i32, i32
  }
  func.func @transform_17(%arg0: i32) -> (i32, i32) {
    %c0_i32 = arith.constant 0 : i32
    %c0_i32_0 = arith.constant 0 : i32
    %c0_i32_1 = arith.constant 0 : i32
    return %c0_i32, %c0_i32_0 : i32, i32
  }
  func.func @transform_18(%arg0: i32) -> (i32, i32) {
    %c0_i32 = arith.constant 0 : i32
    %c0_i32_0 = arith.constant 0 : i32
    %c0_i32_1 = arith.constant 0 : i32
    return %c0_i32, %c0_i32_0 : i32, i32
  }
  func.func @transform_19(%arg0: i32) -> (i32, i32) {
    %c0_i32 = arith.constant 0 : i32
    %c0_i32_0 = arith.constant 0 : i32
    %c0_i32_1 = arith.constant 0 : i32
    return %c0_i32, %c0_i32_0 : i32, i32
  }
  func.func @transform_20(%arg0: i32) -> (i32, i32) {
    %c0_i32 = arith.constant 0 : i32
    %c0_i32_0 = arith.constant 0 : i32
    return %arg0, %c0_i32 : i32, i32
  }
  func.func @transform_21(%arg0: i32) -> (i32, i32, i32) {
    %c0_i32 = arith.constant 0 : i32
    %c0_i32_0 = arith.constant 0 : i32
    %c0_i32_1 = arith.constant 0 : i32
    return %arg0, %c0_i32, %c0_i32_0 : i32, i32, i32
  }
}

</mosaic_0001>

<llo_original>
// kernel: model_forward.1
$region0: #{model_forward.1}
  #allocation0 [shape = 'u32[]', space=smem, size = 0x4, offset = 0x4, fixed_abs, tag = 'smem constant byte address 0x4 - core index']
  #allocation1 [shape = 'u32[144,128]{1,0:T(1,128)}', space=vmem, size = 0x12000, scoped, tag = 'internal scratch']
  #allocation2 [shape = 'f32[1,1]{1,0:T(1,128)S(1)}', space=vmem, size = 0x200, scoped, tag = 'scoped memory for model_forward.1']
  #allocation3 [shape = 'f32[1,1]{1,0:T(1,128)S(1)}', space=vmem, size = 0x200, scoped, tag = 'scoped memory for model_forward.1']
  %s0 = inlined_call_operand.vmem [shape: bf16[8,80], index: 0, kind: input, shape index: {}]
  %s1 = inlined_call_operand.vmem [shape: bf16[8,8,80], index: 1, kind: input, shape index: {}]
  %s2 = inlined_call_operand.vmem [shape: f32[8,4], index: 2, kind: input, shape index: {}]
  %s3 = inlined_call_operand.vmem [shape: bf16[80,80], index: 3, kind: input, shape index: {}]
  %s4 = inlined_call_operand.vmem [shape: bf16[80,80], index: 4, kind: input, shape index: {}]
  %s5 = inlined_call_operand.vmem [shape: bf16[80,80], index: 5, kind: input, shape index: {}]
  %s6 = inlined_call_operand.vmem [shape: f32[1,80], index: 6, kind: input, shape index: {}]
  %s7 = inlined_call_operand.vmem [shape: bf16[80,40], index: 7, kind: input, shape index: {}]
  %s8 = inlined_call_operand.vmem [shape: f32[1,40], index: 8, kind: input, shape index: {}]
  %s9 = inlined_call_operand.vmem [shape: f32[1,40], index: 9, kind: input, shape index: {}]
  %s10 = inlined_call_operand.<no memory space> [shape: f32[1,1], index: 10, kind: input, shape index: {}]
  %s11 = inlined_call_operand.vmem [shape: bf16[80,80], index: 11, kind: input, shape index: {}]
  %s12 = inlined_call_operand.vmem [shape: f32[1,80], index: 12, kind: input, shape index: {}]
  %s13 = inlined_call_operand.vmem [shape: bf16[80,80], index: 13, kind: input, shape index: {}]
  %s14 = inlined_call_operand.vmem [shape: bf16[80,80], index: 14, kind: input, shape index: {}]
  %s15 = inlined_call_operand.vmem [shape: f32[1,80], index: 15, kind: input, shape index: {}]
  %s16 = inlined_call_operand.vmem [shape: bf16[80,40], index: 16, kind: input, shape index: {}]
  %s17 = inlined_call_operand.vmem [shape: f32[1,40], index: 17, kind: input, shape index: {}]
  %s18 = inlined_call_operand.vmem [shape: f32[1,40], index: 18, kind: input, shape index: {}]
  %s19 = inlined_call_operand.<no memory space> [shape: f32[1,1], index: 19, kind: input, shape index: {}]
  %s20 = inlined_call_operand.vmem [shape: f32[8,128], index: 20, kind: output, shape index: {0}]
  %s21 = inlined_call_operand.vmem [shape: f32[1,8,128], index: 21, kind: output, shape index: {1}]
  %22 = xla_tuple %s20, %s21
  %s23 = sld [smem:[#allocation0]]
  $region98: #{model_forward.1} parent=0
    _
  %s25 = ssub.s32 1, %s23
  %s26 = scalar_select 0, %s25, %s23
  %v27 = vstv %s10
  %28 = vst [vmem:[#allocation2] sm:$0x1] %v27
  %v29 = vstv %s19
  %30 = vst [vmem:[#allocation3] sm:$0x1] %v29
  // Predicated region
  $region2: #{model_forward.1} parent=0 // pred_check
    _
  $region3: #{model_forward.1} parent=0 // pred_check_branch
    %32 = sbr.rel (0) target = $region5
  $region4: #{model_forward.1} parent=0 // pred_region
    _
  $region5: #{model_forward.1} parent=0 // pred_fallthru
    _
  // Predicated region
  $region6: #{model_forward.1} parent=0 // pred_check
    _
  $region7: #{model_forward.1} parent=0 // pred_check_branch
    %34 = sbr.rel (0) target = $region9
  $region8: #{model_forward.1} parent=0 // pred_region
    _
  $region9: #{model_forward.1} parent=0 // pred_fallthru
    _
  // Predicated region
  $region10: #{model_forward.1} parent=0 // pred_check
    _
  $region11: #{model_forward.1} parent=0 // pred_check_branch
    %36 = sbr.rel (0) target = $region13
  $region12: #{model_forward.1} parent=0 // pred_region
    _
  $region13: #{model_forward.1} parent=0 // pred_fallthru
    _
  // Predicated region
  $region14: #{model_forward.1} parent=0 // pred_check
    _
  $region15: #{model_forward.1} parent=0 // pred_check_branch
    %38 = sbr.rel (0) target = $region17
  $region16: #{model_forward.1} parent=0 // pred_region
    _
  $region17: #{model_forward.1} parent=0 // pred_fallthru
    _
  // Predicated region
  $region18: #{model_forward.1} parent=0 // pred_check
    _
  $region19: #{model_forward.1} parent=0 // pred_check_branch
    %40 = sbr.rel (0) target = $region21
  $region20: #{model_forward.1} parent=0 // pred_region
    _
  $region21: #{model_forward.1} parent=0 // pred_fallthru
    _
  // Predicated region
  $region22: #{model_forward.1} parent=0 // pred_check
    _
  $region23: #{model_forward.1} parent=0 // pred_check_branch
    %42 = sbr.rel (0) target = $region25
  $region24: #{model_forward.1} parent=0 // pred_region
    _
  $region25: #{model_forward.1} parent=0 // pred_fallthru
    _
  // Predicated region
  $region26: #{model_forward.1} parent=0 // pred_check
    _
  $region27: #{model_forward.1} parent=0 // pred_check_branch
    %44 = sbr.rel (0) target = $region29
  $region28: #{model_forward.1} parent=0 // pred_region
    _
  $region29: #{model_forward.1} parent=0 // pred_fallthru
    _
  // Predicated region
  $region30: #{model_forward.1} parent=0 // pred_check
    _
  $region31: #{model_forward.1} parent=0 // pred_check_branch
    %46 = sbr.rel (0) target = $region33
  $region32: #{model_forward.1} parent=0 // pred_region
    _
  $region33: #{model_forward.1} parent=0 // pred_fallthru
    _
  // Predicated region
  $region34: #{model_forward.1} parent=0 // pred_check
    _
  $region35: #{model_forward.1} parent=0 // pred_check_branch
    %48 = sbr.rel (0) target = $region37
  $region36: #{model_forward.1} parent=0 // pred_region
    _
  $region37: #{model_forward.1} parent=0 // pred_fallthru
    _
  // Predicated region
  $region38: #{model_forward.1} parent=0 // pred_check
    _
  $region39: #{model_forward.1} parent=0 // pred_check_branch
    %50 = sbr.rel (0) target = $region41
  $region40: #{model_forward.1} parent=0 // pred_region
    _
  $region41: #{model_forward.1} parent=0 // pred_fallthru
    _
  // Predicated region
  $region42: #{model_forward.1} parent=0 // pred_check
    _
  $region43: #{model_forward.1} parent=0 // pred_check_branch
    %52 = sbr.rel (0) target = $region45
  $region44: #{model_forward.1} parent=0 // pred_region
    _
  $region45: #{model_forward.1} parent=0 // pred_fallthru
    _
  // Predicated region
  $region46: #{model_forward.1} parent=0 // pred_check
    _
  $region47: #{model_forward.1} parent=0 // pred_check_branch
    %54 = sbr.rel (0) target = $region49
  $region48: #{model_forward.1} parent=0 // pred_region
    _
  $region49: #{model_forward.1} parent=0 // pred_fallthru
    _
  // Predicated region
  $region50: #{model_forward.1} parent=0 // pred_check
    _
  $region51: #{model_forward.1} parent=0 // pred_check_branch
    %56 = sbr.rel (0) target = $region53
  $region52: #{model_forward.1} parent=0 // pred_region
    _
  $region53: #{model_forward.1} parent=0 // pred_fallthru
    _
  // Predicated region
  $region54: #{model_forward.1} parent=0 // pred_check
    _
  $region55: #{model_forward.1} parent=0 // pred_check_branch
    %58 = sbr.rel (0) target = $region57
  $region56: #{model_forward.1} parent=0 // pred_region
    _
  $region57: #{model_forward.1} parent=0 // pred_fallthru
    _
  // Predicated region
  $region58: #{model_forward.1} parent=0 // pred_check
    _
  $region59: #{model_forward.1} parent=0 // pred_check_branch
    %60 = sbr.rel (0) target = $region61
  $region60: #{model_forward.1} parent=0 // pred_region
    _
  $region61: #{model_forward.1} parent=0 // pred_fallthru
    _
  // Predicated region
  $region62: #{model_forward.1} parent=0 // pred_check
    _
  $region63: #{model_forward.1} parent=0 // pred_check_branch
    %62 = sbr.rel (0) target = $region65
  $region64: #{model_forward.1} parent=0 // pred_region
    _
  $region65: #{model_forward.1} parent=0 // pred_fallthru
    _
  // Predicated region
  $region66: #{model_forward.1} parent=0 // pred_check
    _
  $region67: #{model_forward.1} parent=0 // pred_check_branch
    %64 = sbr.rel (0) target = $region69
  $region68: #{model_forward.1} parent=0 // pred_region
    _
  $region69: #{model_forward.1} parent=0 // pred_fallthru
    _
  // Predicated region
  $region70: #{model_forward.1} parent=0 // pred_check
    _
  $region71: #{model_forward.1} parent=0 // pred_check_branch
    %66 = sbr.rel (0) target = $region73
  $region72: #{model_forward.1} parent=0 // pred_region
    _
  $region73: #{model_forward.1} parent=0 // pred_fallthru
    _
  // Predicated region
  $region74: #{model_forward.1} parent=0 // pred_check
    _
  $region75: #{model_forward.1} parent=0 // pred_check_branch
    %68 = sbr.rel (0) target = $region77
  $region76: #{model_forward.1} parent=0 // pred_region
    _
  $region77: #{model_forward.1} parent=0 // pred_fallthru
    _
  // Predicated region
  $region78: #{model_forward.1} parent=0 // pred_check
    _
  $region79: #{model_forward.1} parent=0 // pred_check_branch
    %70 = sbr.rel (0) target = $region81
  $region80: #{model_forward.1} parent=0 // pred_region
    _
  $region81: #{model_forward.1} parent=0 // pred_fallthru
    _
  %v73 = vld [vmem:[%s0] sm:$0xf]
  %v74 = vld [vmem:[%s1] sm:$0xf]
  %v75 = vld [vmem:[%s1 + $0x4] sm:$0xf]
  %v76 = vld [vmem:[%s1 + $0x8] sm:$0xf]
  %v77 = vld [vmem:[%s1 + $0xc] sm:$0xf]
  %v78 = vld [vmem:[%s1 + $0x10] sm:$0xf]
  %v79 = vld [vmem:[%s1 + $0x14] sm:$0xf]
  %v80 = vld [vmem:[%s1 + $0x18] sm:$0xf]
  %v81 = vld [vmem:[%s1 + $0x1c] sm:$0xf]
  %v82 = vld [vmem:[%s2] sm:$0xff]
  %v83 = vcvt.f32.s32.to.zero.pseudo %v82
  %v84 = vld [vmem:[%s3] sm:$0xf]
  %v85 = vld [vmem:[%s3 + $0x4] sm:$0xf]
  %v86 = vld [vmem:[%s3 + $0x8] sm:$0xf]
  %v87 = vld [vmem:[%s3 + $0xc] sm:$0xf]
  %v88 = vld [vmem:[%s3 + $0x10] sm:$0xf]
  %v89 = vld [vmem:[%s3 + $0x14] sm:$0xf]
  %v90 = vld [vmem:[%s3 + $0x18] sm:$0xf]
  %v91 = vld [vmem:[%s3 + $0x1c] sm:$0xf]
  %v92 = vld [vmem:[%s3 + $0x20] sm:$0xf]
  %v93 = vld [vmem:[%s3 + $0x24] sm:$0xf]
  %v94 = vld [vmem:[%s6] sm:$0x1]
  %v96 = vlaneseq
  %v97 = vshrl.u32 %v96, 7
  %v98 = vsub.s32 0, %v97
  %v99 = vrot.slane %v94, %v98
  %v111 = vunpack.c.l.b16 %v84
  %v112 = vunpack.c.l.b16 %v85
  %v113 = vunpack.c.l.b16 %v86
  %v114 = vunpack.c.l.b16 %v87
  %v115 = vunpack.c.l.b16 %v88
  %v116 = vunpack.c.l.b16 %v89
  %v117 = vunpack.c.l.b16 %v90
  %v118 = vunpack.c.l.b16 %v91
  %v119 = vunpack.c.l.b16 %v92
  %v120 = vunpack.c.l.b16 %v93
  %v121 = vpack.c.b16 %v112, %v111
  %v122 = vpack.c.b16 %v114, %v113
  %v123 = vpack.c.b16 %v116, %v115
  %v124 = vpack.c.b16 %v118, %v117
  %v125 = vpack.c.b16 %v120, %v119
  %vm131 = vcmask 654336
  %v133 = vsel %vm131, %v73, 0
  %135 = vmatprep.subr.bf16.mxu0 0
  %136 = vmatpush1.bf16.msra.mxu0 0
  %137 = vmatprep.subr.bf16.mxu0 0
  %138 = vmatpush1.bf16.msra.mxu0 0
  %139 = vmatprep.subr.bf16.mxu0 0
  %140 = vmatpush1.bf16.msra.mxu0 0
  %141 = vmatprep.subr.bf16.mxu0 0
  %142 = vmatpush1.bf16.msra.mxu0 %v125
  %143 = vmatprep.subr.bf16.mxu0 0
  %144 = vmatpush1.bf16.msra.mxu0 %v124
  %145 = vmatprep.subr.bf16.mxu0 0
  %146 = vmatpush1.bf16.msra.mxu0 %v123
  %147 = vmatprep.subr.bf16.mxu0 0
  %148 = vmatpush1.bf16.msra.mxu0 %v122
  %149 = vmatprep.subr.bf16.mxu0 0
  %150 = vmatpush1.bf16.msra.mxu0 %v121
  %151 = vmatprep.subr.bf16.mxu0 0
  %152 = vmatpush2.bf16.msra.mxu0 0
  %153 = vmatprep.subr.bf16.mxu0 0
  %154 = vmatpush2.bf16.msra.mxu0 0
  %155 = vmatprep.subr.bf16.mxu0 0
  %156 = vmatpush2.bf16.msra.mxu0 0
  %157 = vmatprep.subr.bf16.mxu0 0
  %158 = vmatpush2.bf16.msra.mxu0 0
  %159 = vmatprep.subr.bf16.mxu0 0
  %160 = vmatpush2.bf16.msra.mxu0 0
  %161 = vmatprep.subr.bf16.mxu0 0
  %162 = vmatpush2.bf16.msra.mxu0 0
  %163 = vmatprep.subr.bf16.mxu0 0
  %164 = vmatpush2.bf16.msra.mxu0 0
  %165 = vmatprep.subr.bf16.mxu0 0
  %166 = vmatpush2.bf16.msra.mxu0 0
  %167 = vmatprep.mubr.bf16.mxu0 0
  %168 = vmatmul.mubr.bf16.gmra.mxu0 %v133
  %v169 = vpop.f32.mrf.mxu0
  %v170 = vadd.f32 %v99, %v169
  %v171 = vpop.f32.mrf.mxu0
  %v172 = vpop.f32.mrf.mxu0
  %v173 = vpop.f32.mrf.mxu0
  %174 = vdwg.mxu0
  %v177 = vunpack.c.l.s4 1966171168
  %v178 = vunpack.c.0.s8 %v177
  %v179 = vlaneseq
  %v180 = vshrl.u32 %v179, 7
  %v181 = vsub.s32 %v178, %v180
  %v182 = vrot.slane %v73, %v181
  %v183 = vcombine.high %v182, %v182
  %v185 = vunpack.c.l.s4 1966171168
  %v186 = vunpack.c.0.s8 %v185
  %v187 = vlaneseq
  %v188 = vshrl.u32 %v187, 7
  %v189 = vsub.s32 %v186, %v188
  %v190 = vrot.slane %v182, %v189
  %v192 = vunpack.c.l.s4 1966171168
  %v193 = vunpack.c.0.s8 %v192
  %v194 = vlaneseq
  %v195 = vshrl.u32 %v194, 7
  %v196 = vsub.s32 %v193, %v195
  %v197 = vrot.slane %v183, %v196
  %v198 = vcombine.high %v190, %v190
  %v199 = vcombine.high %v197, %v197
  %v200 = vunpack.i.l.s16 %v190
  %v201 = vunpack.i.h.s16 %v190
  %v202 = vunpack.i.l.s16 %v197
  %v203 = vunpack.i.h.s16 %v197
  %v204 = vunpack.i.l.s16 %v198
  %v205 = vunpack.i.h.s16 %v198
  %v206 = vunpack.i.l.s16 %v199
  %v207 = vunpack.i.h.s16 %v199
  %v208 = vpack.i.b16 %v200, %v200
  %v209 = vpack.i.b16 %v201, %v201
  %v210 = vpack.i.b16 %v202, %v202
  %v211 = vpack.i.b16 %v203, %v203
  %v212 = vpack.i.b16 %v204, %v204
  %v213 = vpack.i.b16 %v205, %v205
  %v214 = vpack.i.b16 %v206, %v206
  %v215 = vpack.i.b16 %v207, %v207
  %v216 = vlaneseq
  %v217 = vshrl.u32 %v216, 7
  %v218 = vsub.s32 0, %v217
  %v219 = vrot.slane %v208, %v218
  %v220 = vlaneseq
  %v221 = vshrl.u32 %v220, 7
  %v222 = vsub.s32 0, %v221
  %v223 = vrot.slane %v209, %v222
  %v224 = vlaneseq
  %v225 = vshrl.u32 %v224, 7
  %v226 = vsub.s32 0, %v225
  %v227 = vrot.slane %v210, %v226
  %v228 = vlaneseq
  %v229 = vshrl.u32 %v228, 7
  %v230 = vsub.s32 0, %v229
  %v231 = vrot.slane %v211, %v230
  %v232 = vlaneseq
  %v233 = vshrl.u32 %v232, 7
  %v234 = vsub.s32 0, %v233
  %v235 = vrot.slane %v212, %v234
  %v236 = vlaneseq
  %v237 = vshrl.u32 %v236, 7
  %v238 = vsub.s32 0, %v237
  %v239 = vrot.slane %v213, %v238
  %v240 = vlaneseq
  %v241 = vshrl.u32 %v240, 7
  %v242 = vsub.s32 0, %v241
  %v243 = vrot.slane %v214, %v242
  %v244 = vlaneseq
  %v245 = vshrl.u32 %v244, 7
  %v246 = vsub.s32 0, %v245
  %v247 = vrot.slane %v215, %v246
  %v249 = vpack.i.b16 %v219, %v219
  %v251 = vlaneseq
  %v252 = vshrl.u32 %v251, 7
  %v253 = vsub.s32 0, %v252
  %v254 = vrot.slane %v249, %v253
  %v256 = vpack.i.b16 %v223, %v223
  %v258 = vlaneseq
  %v259 = vshrl.u32 %v258, 7
  %v260 = vsub.s32 0, %v259
  %v261 = vrot.slane %v256, %v260
  %v263 = vpack.i.b16 %v227, %v227
  %v265 = vlaneseq
  %v266 = vshrl.u32 %v265, 7
  %v267 = vsub.s32 0, %v266
  %v268 = vrot.slane %v263, %v267
  %v270 = vpack.i.b16 %v231, %v231
  %v272 = vlaneseq
  %v273 = vshrl.u32 %v272, 7
  %v274 = vsub.s32 0, %v273
  %v275 = vrot.slane %v270, %v274
  %v277 = vpack.i.b16 %v235, %v235
  %v279 = vlaneseq
  %v280 = vshrl.u32 %v279, 7
  %v281 = vsub.s32 0, %v280
  %v282 = vrot.slane %v277, %v281
  %v284 = vpack.i.b16 %v239, %v239
  %v286 = vlaneseq
  %v287 = vshrl.u32 %v286, 7
  %v288 = vsub.s32 0, %v287
  %v289 = vrot.slane %v284, %v288
  %v291 = vpack.i.b16 %v243, %v243
  %v293 = vlaneseq
  %v294 = vshrl.u32 %v293, 7
  %v295 = vsub.s32 0, %v294
  %v296 = vrot.slane %v291, %v295
  %v298 = vpack.i.b16 %v247, %v247
  %v300 = vlaneseq
  %v301 = vshrl.u32 %v300, 7
  %v302 = vsub.s32 0, %v301
  %v303 = vrot.slane %v298, %v302
  %v304 = vmul.bf16 %v254, %v74
  %v305 = vmul.bf16 %v261, %v75
  %v306 = vmul.bf16 %v268, %v76
  %v307 = vmul.bf16 %v275, %v77
  %v308 = vmul.bf16 %v282, %v78
  %v309 = vmul.bf16 %v289, %v79
  %v310 = vmul.bf16 %v296, %v80
  %v311 = vmul.bf16 %v303, %v81
  %v312 = vld [vmem:[%s4] sm:$0xf]
  %v313 = vld [vmem:[%s4 + $0x4] sm:$0xf]
  %v314 = vld [vmem:[%s4 + $0x8] sm:$0xf]
  %v315 = vld [vmem:[%s4 + $0xc] sm:$0xf]
  %v316 = vld [vmem:[%s4 + $0x10] sm:$0xf]
  %v317 = vld [vmem:[%s4 + $0x14] sm:$0xf]
  %v318 = vld [vmem:[%s4 + $0x18] sm:$0xf]
  %v319 = vld [vmem:[%s4 + $0x1c] sm:$0xf]
  %v320 = vld [vmem:[%s4 + $0x20] sm:$0xf]
  %v321 = vld [vmem:[%s4 + $0x24] sm:$0xf]
  %v322 = vld [vmem:[%s5] sm:$0xf]
  %v323 = vld [vmem:[%s5 + $0x4] sm:$0xf]
  %v324 = vld [vmem:[%s5 + $0x8] sm:$0xf]
  %v325 = vld [vmem:[%s5 + $0xc] sm:$0xf]
  %v326 = vld [vmem:[%s5 + $0x10] sm:$0xf]
  %v327 = vld [vmem:[%s5 + $0x14] sm:$0xf]
  %v328 = vld [vmem:[%s5 + $0x18] sm:$0xf]
  %v329 = vld [vmem:[%s5 + $0x1c] sm:$0xf]
  %v330 = vld [vmem:[%s5 + $0x20] sm:$0xf]
  %v331 = vld [vmem:[%s5 + $0x24] sm:$0xf]
  %v340 = vunpack.c.l.b16 %v304
  %v341 = vunpack.c.l.b16 %v305
  %v342 = vunpack.c.l.b16 %v306
  %v343 = vunpack.c.l.b16 %v307
  %v344 = vunpack.c.l.b16 %v308
  %v345 = vunpack.c.l.b16 %v309
  %v346 = vunpack.c.l.b16 %v310
  %v347 = vunpack.c.l.b16 %v311
  %v348 = vpack.c.b16 %v341, %v340
  %v349 = vpack.c.b16 %v343, %v342
  %v350 = vpack.c.b16 %v345, %v344
  %v351 = vpack.c.b16 %v347, %v346
  %v362 = vunpack.c.l.b16 %v322
  %v363 = vunpack.c.l.b16 %v323
  %v364 = vunpack.c.l.b16 %v324
  %v365 = vunpack.c.l.b16 %v325
  %v366 = vunpack.c.l.b16 %v326
  %v367 = vunpack.c.l.b16 %v327
  %v368 = vunpack.c.l.b16 %v328
  %v369 = vunpack.c.l.b16 %v329
  %v370 = vunpack.c.l.b16 %v330
  %v371 = vunpack.c.l.b16 %v331
  %v372 = vpack.c.b16 %v363, %v362
  %v373 = vpack.c.b16 %v365, %v364
  %v374 = vpack.c.b16 %v367, %v366
  %v375 = vpack.c.b16 %v369, %v368
  %v376 = vpack.c.b16 %v371, %v370
  %v383 = vsel %vm131, %v348, 0
  %v386 = vsel %vm131, %v349, 0
  %v389 = vsel %vm131, %v350, 0
  %v392 = vsel %vm131, %v351, 0
  %394 = vmatprep.subr.bf16.mxu0 0
  %395 = vmatpush1.bf16.msra.mxu0 0
  %396 = vmatprep.subr.bf16.mxu0 0
  %397 = vmatpush1.bf16.msra.mxu0 0
  %398 = vmatprep.subr.bf16.mxu0 0
  %399 = vmatpush1.bf16.msra.mxu0 0
  %400 = vmatprep.subr.bf16.mxu0 0
  %401 = vmatpush1.bf16.msra.mxu0 %v376
  %402 = vmatprep.subr.bf16.mxu0 0
  %403 = vmatpush1.bf16.msra.mxu0 %v375
  %404 = vmatprep.subr.bf16.mxu0 0
  %405 = vmatpush1.bf16.msra.mxu0 %v374
  %406 = vmatprep.subr.bf16.mxu0 0
  %407 = vmatpush1.bf16.msra.mxu0 %v373
  %408 = vmatprep.subr.bf16.mxu0 0
  %409 = vmatpush1.bf16.msra.mxu0 %v372
  %410 = vmatprep.subr.bf16.mxu0 0
  %411 = vmatpush2.bf16.msra.mxu0 0
  %412 = vmatprep.subr.bf16.mxu0 0
  %413 = vmatpush2.bf16.msra.mxu0 0
  %414 = vmatprep.subr.bf16.mxu0 0
  %415 = vmatpush2.bf16.msra.mxu0 0
  %416 = vmatprep.subr.bf16.mxu0 0
  %417 = vmatpush2.bf16.msra.mxu0 0
  %418 = vmatprep.subr.bf16.mxu0 0
  %419 = vmatpush2.bf16.msra.mxu0 0
  %420 = vmatprep.subr.bf16.mxu0 0
  %421 = vmatpush2.bf16.msra.mxu0 0
  %422 = vmatprep.subr.bf16.mxu0 0
  %423 = vmatpush2.bf16.msra.mxu0 0
  %424 = vmatprep.subr.bf16.mxu0 0
  %425 = vmatpush2.bf16.msra.mxu0 0
  %426 = vmatprep.mubr.bf16.mxu0 0
  %427 = vmatmul.mubr.bf16.gmra.mxu0 %v383
  %v428 = vpop.f32.mrf.mxu0
  %v429 = vadd.f32 0.0, %v428
  %v430 = vpop.f32.mrf.mxu0
  %v431 = vpop.f32.mrf.mxu0
  %v432 = vadd.f32 0.0, %v431
  %v433 = vpop.f32.mrf.mxu0
  %434 = vmatprep.mubr.bf16.mxu0 0
  %435 = vmatmul.mubr.bf16.gmra.mxu0 %v386
  %v436 = vpop.f32.mrf.mxu0
  %v437 = vadd.f32 0.0, %v436
  %v438 = vpop.f32.mrf.mxu0
  %v439 = vpop.f32.mrf.mxu0
  %v440 = vadd.f32 0.0, %v439
  %v441 = vpop.f32.mrf.mxu0
  %442 = vmatprep.mubr.bf16.mxu0 0
  %443 = vmatmul.mubr.bf16.gmra.mxu0 %v389
  %v444 = vpop.f32.mrf.mxu0
  %v445 = vadd.f32 0.0, %v444
  %v446 = vpop.f32.mrf.mxu0
  %v447 = vpop.f32.mrf.mxu0
  %v448 = vadd.f32 0.0, %v447
  %v449 = vpop.f32.mrf.mxu0
  %450 = vmatprep.mubr.bf16.mxu0 0
  %451 = vmatmul.mubr.bf16.gmra.mxu0 %v392
  %v452 = vpop.f32.mrf.mxu0
  %v453 = vadd.f32 0.0, %v452
  %v454 = vpop.f32.mrf.mxu0
  %v455 = vpop.f32.mrf.mxu0
  %v456 = vadd.f32 0.0, %v455
  %v457 = vpop.f32.mrf.mxu0
  %458 = vdwg.mxu0
  %v467 = vunpack.c.l.b16 %v74
  %v468 = vunpack.c.l.b16 %v75
  %v469 = vunpack.c.l.b16 %v76
  %v470 = vunpack.c.l.b16 %v77
  %v471 = vunpack.c.l.b16 %v78
  %v472 = vunpack.c.l.b16 %v79
  %v473 = vunpack.c.l.b16 %v80
  %v474 = vunpack.c.l.b16 %v81
  %v475 = vpack.c.b16 %v468, %v467
  %v476 = vpack.c.b16 %v470, %v469
  %v477 = vpack.c.b16 %v472, %v471
  %v478 = vpack.c.b16 %v474, %v473
  %v489 = vunpack.c.l.b16 %v312
  %v490 = vunpack.c.l.b16 %v313
  %v491 = vunpack.c.l.b16 %v314
  %v492 = vunpack.c.l.b16 %v315
  %v493 = vunpack.c.l.b16 %v316
  %v494 = vunpack.c.l.b16 %v317
  %v495 = vunpack.c.l.b16 %v318
  %v496 = vunpack.c.l.b16 %v319
  %v497 = vunpack.c.l.b16 %v320
  %v498 = vunpack.c.l.b16 %v321
  %v499 = vpack.c.b16 %v490, %v489
  %v500 = vpack.c.b16 %v492, %v491
  %v501 = vpack.c.b16 %v494, %v493
  %v502 = vpack.c.b16 %v496, %v495
  %v503 = vpack.c.b16 %v498, %v497
  %v510 = vsel %vm131, %v475, 0
  %v513 = vsel %vm131, %v476, 0
  %v516 = vsel %vm131, %v477, 0
  %v519 = vsel %vm131, %v478, 0
  %521 = vmatprep.subr.bf16.mxu0 0
  %522 = vmatpush1.bf16.msra.mxu0 0
  %523 = vmatprep.subr.bf16.mxu0 0
  %524 = vmatpush1.bf16.msra.mxu0 0
  %525 = vmatprep.subr.bf16.mxu0 0
  %526 = vmatpush1.bf16.msra.mxu0 0
  %527 = vmatprep.subr.bf16.mxu0 0
  %528 = vmatpush1.bf16.msra.mxu0 %v503
  %529 = vmatprep.subr.bf16.mxu0 0
  %530 = vmatpush1.bf16.msra.mxu0 %v502
  %531 = vmatprep.subr.bf16.mxu0 0
  %532 = vmatpush1.bf16.msra.mxu0 %v501
  %533 = vmatprep.subr.bf16.mxu0 0
  %534 = vmatpush1.bf16.msra.mxu0 %v500
  %535 = vmatprep.subr.bf16.mxu0 0
  %536 = vmatpush1.bf16.msra.mxu0 %v499
  %537 = vmatprep.subr.bf16.mxu0 0
  %538 = vmatpush2.bf16.msra.mxu0 0
  %539 = vmatprep.subr.bf16.mxu0 0
  %540 = vmatpush2.bf16.msra.mxu0 0
  %541 = vmatprep.subr.bf16.mxu0 0
  %542 = vmatpush2.bf16.msra.mxu0 0
  %543 = vmatprep.subr.bf16.mxu0 0
  %544 = vmatpush2.bf16.msra.mxu0 0
  %545 = vmatprep.subr.bf16.mxu0 0
  %546 = vmatpush2.bf16.msra.mxu0 0
  %547 = vmatprep.subr.bf16.mxu0 0
  %548 = vmatpush2.bf16.msra.mxu0 0
  %549 = vmatprep.subr.bf16.mxu0 0
  %550 = vmatpush2.bf16.msra.mxu0 0
  %551 = vmatprep.subr.bf16.mxu0 0
  %552 = vmatpush2.bf16.msra.mxu0 0
  %553 = vmatprep.mubr.bf16.mxu0 0
  %554 = vmatmul.mubr.bf16.gmra.mxu0 %v510
  %v555 = vpop.f32.mrf.mxu0
  %v556 = vadd.f32 %v429, %v555
  %v557 = vpop.f32.mrf.mxu0
  %v558 = vpop.f32.mrf.mxu0
  %v559 = vadd.f32 %v432, %v558
  %v560 = vpop.f32.mrf.mxu0
  %561 = vmatprep.mubr.bf16.mxu0 0
  %562 = vmatmul.mubr.bf16.gmra.mxu0 %v513
  %v563 = vpop.f32.mrf.mxu0
  %v564 = vadd.f32 %v437, %v563
  %v565 = vpop.f32.mrf.mxu0
  %v566 = vpop.f32.mrf.mxu0
  %v567 = vadd.f32 %v440, %v566
  %v568 = vpop.f32.mrf.mxu0
  %569 = vmatprep.mubr.bf16.mxu0 0
  %570 = vmatmul.mubr.bf16.gmra.mxu0 %v516
  %v571 = vpop.f32.mrf.mxu0
  %v572 = vadd.f32 %v445, %v571
  %v573 = vpop.f32.mrf.mxu0
  %v574 = vpop.f32.mrf.mxu0
  %v575 = vadd.f32 %v448, %v574
  %v576 = vpop.f32.mrf.mxu0
  %577 = vmatprep.mubr.bf16.mxu0 0
  %578 = vmatmul.mubr.bf16.gmra.mxu0 %v519
  %v579 = vpop.f32.mrf.mxu0
  %v580 = vadd.f32 %v453, %v579
  %v581 = vpop.f32.mrf.mxu0
  %v582 = vpop.f32.mrf.mxu0
  %v583 = vadd.f32 %v456, %v582
  %v584 = vpop.f32.mrf.mxu0
  %585 = vdwg.mxu0
  %v587 = vcombine.high %v170, %v170
  %v589 = vunpack.c.l.s4 1966171168
  %v590 = vunpack.c.0.s8 %v589
  %v591 = vlaneseq
  %v592 = vshrl.u32 %v591, 7
  %v593 = vsub.s32 %v590, %v592
  %v594 = vrot.slane %v170, %v593
  %v596 = vunpack.c.l.s4 1966171168
  %v597 = vunpack.c.0.s8 %v596
  %v598 = vlaneseq
  %v599 = vshrl.u32 %v598, 7
  %v600 = vsub.s32 %v597, %v599
  %v601 = vrot.slane %v587, %v600
  %v602 = vcombine.high %v594, %v594
  %v603 = vcombine.high %v601, %v601
  %v605 = vunpack.c.l.s4 1966171168
  %v606 = vunpack.c.0.s8 %v605
  %v607 = vlaneseq
  %v608 = vshrl.u32 %v607, 7
  %v609 = vsub.s32 %v606, %v608
  %v610 = vrot.slane %v594, %v609
  %v612 = vunpack.c.l.s4 1966171168
  %v613 = vunpack.c.0.s8 %v612
  %v614 = vlaneseq
  %v615 = vshrl.u32 %v614, 7
  %v616 = vsub.s32 %v613, %v615
  %v617 = vrot.slane %v601, %v616
  %v619 = vunpack.c.l.s4 1966171168
  %v620 = vunpack.c.0.s8 %v619
  %v621 = vlaneseq
  %v622 = vshrl.u32 %v621, 7
  %v623 = vsub.s32 %v620, %v622
  %v624 = vrot.slane %v602, %v623
  %v626 = vunpack.c.l.s4 1966171168
  %v627 = vunpack.c.0.s8 %v626
  %v628 = vlaneseq
  %v629 = vshrl.u32 %v628, 7
  %v630 = vsub.s32 %v627, %v629
  %v631 = vrot.slane %v603, %v630
  %v632 = vcombine.high %v610, %v610
  %v633 = vcombine.high %v617, %v617
  %v634 = vcombine.high %v624, %v624
  %v635 = vcombine.high %v631, %v631
  %v636 = vlaneseq
  %v637 = vshrl.u32 %v636, 7
  %v638 = vsub.s32 0, %v637
  %v639 = vrot.slane %v610, %v638
  %v640 = vlaneseq
  %v641 = vshrl.u32 %v640, 7
  %v642 = vsub.s32 0, %v641
  %v643 = vrot.slane %v624, %v642
  %v644 = vlaneseq
  %v645 = vshrl.u32 %v644, 7
  %v646 = vsub.s32 0, %v645
  %v647 = vrot.slane %v632, %v646
  %v648 = vlaneseq
  %v649 = vshrl.u32 %v648, 7
  %v650 = vsub.s32 0, %v649
  %v651 = vrot.slane %v634, %v650
  %v652 = vlaneseq
  %v653 = vshrl.u32 %v652, 7
  %v654 = vsub.s32 0, %v653
  %v655 = vrot.slane %v617, %v654
  %v656 = vlaneseq
  %v657 = vshrl.u32 %v656, 7
  %v658 = vsub.s32 0, %v657
  %v659 = vrot.slane %v631, %v658
  %v660 = vlaneseq
  %v661 = vshrl.u32 %v660, 7
  %v662 = vsub.s32 0, %v661
  %v663 = vrot.slane %v633, %v662
  %v664 = vlaneseq
  %v665 = vshrl.u32 %v664, 7
  %v666 = vsub.s32 0, %v665
  %v667 = vrot.slane %v635, %v666
  %v676 = vadd.f32 %v556, %v639
  %v677 = vadd.f32 %v559, %v643
  %v678 = vadd.f32 %v564, %v647
  %v679 = vadd.f32 %v567, %v651
  %v680 = vadd.f32 %v572, %v655
  %v681 = vadd.f32 %v575, %v659
  %v682 = vadd.f32 %v580, %v663
  %v683 = vadd.f32 %v583, %v667
  %v684 = vpack.c.bf16 %v676, %v676
  %v685 = vpack.c.bf16 %v677, %v677
  %v686 = vpack.c.bf16 %v678, %v678
  %v687 = vpack.c.bf16 %v679, %v679
  %v688 = vpack.c.bf16 %v680, %v680
  %v689 = vpack.c.bf16 %v681, %v681
  %v690 = vpack.c.bf16 %v682, %v682
  %v691 = vpack.c.bf16 %v683, %v683
  %v692 = vxor.u32 %v684, 2147516416
  %v693 = vxor.u32 %v685, 2147516416
  %v694 = vxor.u32 %v686, 2147516416
  %v695 = vxor.u32 %v687, 2147516416
  %v696 = vxor.u32 %v688, 2147516416
  %v697 = vxor.u32 %v689, 2147516416
  %v698 = vxor.u32 %v690, 2147516416
  %v699 = vxor.u32 %v691, 2147516416
  %v701 = vmul.bf16 %v692, 1069105081
  %v702 = vpow.bf16.pop %v701
  %v704 = vmul.bf16 %v693, 1069105081
  %v705 = vpow.bf16.pop %v704
  %v707 = vmul.bf16 %v694, 1069105081
  %v708 = vpow.bf16.pop %v707
  %v710 = vmul.bf16 %v695, 1069105081
  %v711 = vpow.bf16.pop %v710
  %v713 = vmul.bf16 %v696, 1069105081
  %v714 = vpow.bf16.pop %v713
  %v716 = vmul.bf16 %v697, 1069105081
  %v717 = vpow.bf16.pop %v716
  %v719 = vmul.bf16 %v698, 1069105081
  %v720 = vpow.bf16.pop %v719
  %v722 = vmul.bf16 %v699, 1069105081
  %v723 = vpow.bf16.pop %v722
  %v724 = vadd.bf16 %v702, 1065369472
  %v725 = vadd.bf16 %v705, 1065369472
  %v726 = vadd.bf16 %v708, 1065369472
  %v727 = vadd.bf16 %v711, 1065369472
  %v728 = vadd.bf16 %v714, 1065369472
  %v729 = vadd.bf16 %v717, 1065369472
  %v730 = vadd.bf16 %v720, 1065369472
  %v731 = vadd.bf16 %v723, 1065369472
  %v732 = vrcp.bf16.pop %v724
  %v733 = vmul.bf16 1065369472, %v732
  %v734 = vrcp.bf16.pop %v725
  %v735 = vmul.bf16 1065369472, %v734
  %v736 = vrcp.bf16.pop %v726
  %v737 = vmul.bf16 1065369472, %v736
  %v738 = vrcp.bf16.pop %v727
  %v739 = vmul.bf16 1065369472, %v738
  %v740 = vrcp.bf16.pop %v728
  %v741 = vmul.bf16 1065369472, %v740
  %v742 = vrcp.bf16.pop %v729
  %v743 = vmul.bf16 1065369472, %v742
  %v744 = vrcp.bf16.pop %v730
  %v745 = vmul.bf16 1065369472, %v744
  %v746 = vrcp.bf16.pop %v731
  %v747 = vmul.bf16 1065369472, %v746
  %v748 = vld [vmem:[%s7] sm:$0xf]
  %v749 = vld [vmem:[%s7 + $0x4] sm:$0xf]
  %v750 = vld [vmem:[%s7 + $0x8] sm:$0xf]
  %v751 = vld [vmem:[%s7 + $0xc] sm:$0xf]
  %v752 = vld [vmem:[%s7 + $0x10] sm:$0xf]
  %v753 = vld [vmem:[%s7 + $0x14] sm:$0xf]
  %v754 = vld [vmem:[%s7 + $0x18] sm:$0xf]
  %v755 = vld [vmem:[%s7 + $0x1c] sm:$0xf]
  %v756 = vld [vmem:[%s7 + $0x20] sm:$0xf]
  %v757 = vld [vmem:[%s7 + $0x24] sm:$0xf]
  %v758 = vld [vmem:[%s8] sm:$0x1]
  %v760 = vlaneseq
  %v761 = vshrl.u32 %v760, 7
  %v762 = vsub.s32 0, %v761
  %v763 = vrot.slane %v758, %v762
  %v773 = vunpack.c.l.b16 %v733
  %v774 = vunpack.c.l.b16 %v735
  %v775 = vunpack.c.l.b16 %v737
  %v776 = vunpack.c.l.b16 %v739
  %v777 = vunpack.c.l.b16 %v741
  %v778 = vunpack.c.l.b16 %v743
  %v779 = vunpack.c.l.b16 %v745
  %v780 = vunpack.c.l.b16 %v747
  %v781 = vpack.c.b16 %v774, %v773
  %v782 = vpack.c.b16 %v776, %v775
  %v783 = vpack.c.b16 %v778, %v777
  %v784 = vpack.c.b16 %v780, %v779
  %v795 = vunpack.c.l.b16 %v748
  %v796 = vunpack.c.l.b16 %v749
  %v797 = vunpack.c.l.b16 %v750
  %v798 = vunpack.c.l.b16 %v751
  %v799 = vunpack.c.l.b16 %v752
  %v800 = vunpack.c.l.b16 %v753
  %v801 = vunpack.c.l.b16 %v754
  %v802 = vunpack.c.l.b16 %v755
  %v803 = vunpack.c.l.b16 %v756
  %v804 = vunpack.c.l.b16 %v757
  %v805 = vpack.c.b16 %v796, %v795
  %v806 = vpack.c.b16 %v798, %v797
  %v807 = vpack.c.b16 %v800, %v799
  %v808 = vpack.c.b16 %v802, %v801
  %v809 = vpack.c.b16 %v804, %v803
  %v816 = vsel %vm131, %v781, 0
  %v819 = vsel %vm131, %v782, 0
  %v822 = vsel %vm131, %v783, 0
  %v825 = vsel %vm131, %v784, 0
  %827 = vmatprep.subr.bf16.mxu0 0
  %828 = vmatpush1.bf16.msra.mxu0 0
  %829 = vmatprep.subr.bf16.mxu0 0
  %830 = vmatpush1.bf16.msra.mxu0 0
  %831 = vmatprep.subr.bf16.mxu0 0
  %832 = vmatpush1.bf16.msra.mxu0 0
  %833 = vmatprep.subr.bf16.mxu0 0
  %834 = vmatpush1.bf16.msra.mxu0 %v809
  %835 = vmatprep.subr.bf16.mxu0 0
  %836 = vmatpush1.bf16.msra.mxu0 %v808
  %837 = vmatprep.subr.bf16.mxu0 0
  %838 = vmatpush1.bf16.msra.mxu0 %v807
  %839 = vmatprep.subr.bf16.mxu0 0
  %840 = vmatpush1.bf16.msra.mxu0 %v806
  %841 = vmatprep.subr.bf16.mxu0 0
  %842 = vmatpush1.bf16.msra.mxu0 %v805
  %843 = vmatprep.subr.bf16.mxu0 0
  %844 = vmatpush2.bf16.msra.mxu0 0
  %845 = vmatprep.subr.bf16.mxu0 0
  %846 = vmatpush2.bf16.msra.mxu0 0
  %847 = vmatprep.subr.bf16.mxu0 0
  %848 = vmatpush2.bf16.msra.mxu0 0
  %849 = vmatprep.subr.bf16.mxu0 0
  %850 = vmatpush2.bf16.msra.mxu0 0
  %851 = vmatprep.subr.bf16.mxu0 0
  %852 = vmatpush2.bf16.msra.mxu0 0
  %853 = vmatprep.subr.bf16.mxu0 0
  %854 = vmatpush2.bf16.msra.mxu0 0
  %855 = vmatprep.subr.bf16.mxu0 0
  %856 = vmatpush2.bf16.msra.mxu0 0
  %857 = vmatprep.subr.bf16.mxu0 0
  %858 = vmatpush2.bf16.msra.mxu0 0
  %859 = vmatprep.mubr.bf16.mxu0 0
  %860 = vmatmul.mubr.bf16.gmra.mxu0 %v816
  %v861 = vpop.f32.mrf.mxu0
  %v862 = vadd.f32 %v763, %v861
  %v863 = vpop.f32.mrf.mxu0
  %v864 = vpop.f32.mrf.mxu0
  %v865 = vadd.f32 %v763, %v864
  %v866 = vpop.f32.mrf.mxu0
  %867 = vmatprep.mubr.bf16.mxu0 0
  %868 = vmatmul.mubr.bf16.gmra.mxu0 %v819
  %v869 = vpop.f32.mrf.mxu0
  %v870 = vadd.f32 %v763, %v869
  %v871 = vpop.f32.mrf.mxu0
  %v872 = vpop.f32.mrf.mxu0
  %v873 = vadd.f32 %v763, %v872
  %v874 = vpop.f32.mrf.mxu0
  %875 = vmatprep.mubr.bf16.mxu0 0
  %876 = vmatmul.mubr.bf16.gmra.mxu0 %v822
  %v877 = vpop.f32.mrf.mxu0
  %v878 = vadd.f32 %v763, %v877
  %v879 = vpop.f32.mrf.mxu0
  %v880 = vpop.f32.mrf.mxu0
  %v881 = vadd.f32 %v763, %v880
  %v882 = vpop.f32.mrf.mxu0
  %883 = vmatprep.mubr.bf16.mxu0 0
  %884 = vmatmul.mubr.bf16.gmra.mxu0 %v825
  %v885 = vpop.f32.mrf.mxu0
  %v886 = vadd.f32 %v763, %v885
  %v887 = vpop.f32.mrf.mxu0
  %v888 = vpop.f32.mrf.mxu0
  %v889 = vadd.f32 %v763, %v888
  %v890 = vpop.f32.mrf.mxu0
  %891 = vdwg.mxu0
  %v892 = vpack.c.bf16 %v865, %v862
  %v893 = vpack.c.bf16 %v873, %v870
  %v894 = vpack.c.bf16 %v881, %v878
  %v895 = vpack.c.bf16 %v889, %v886
  %v896 = vxor.u32 %v892, 2147516416
  %v897 = vxor.u32 %v893, 2147516416
  %v898 = vxor.u32 %v894, 2147516416
  %v899 = vxor.u32 %v895, 2147516416
  %v901 = vmul.bf16 %v896, 1069105081
  %v902 = vpow.bf16.pop %v901
  %v904 = vmul.bf16 %v897, 1069105081
  %v905 = vpow.bf16.pop %v904
  %v907 = vmul.bf16 %v898, 1069105081
  %v908 = vpow.bf16.pop %v907
  %v910 = vmul.bf16 %v899, 1069105081
  %v911 = vpow.bf16.pop %v910
  %v912 = vadd.bf16 %v902, 1065369472
  %v913 = vadd.bf16 %v905, 1065369472
  %v914 = vadd.bf16 %v908, 1065369472
  %v915 = vadd.bf16 %v911, 1065369472
  %v916 = vrcp.bf16.pop %v912
  %v917 = vmul.bf16 1065369472, %v916
  %v918 = vrcp.bf16.pop %v913
  %v919 = vmul.bf16 1065369472, %v918
  %v920 = vrcp.bf16.pop %v914
  %v921 = vmul.bf16 1065369472, %v920
  %v922 = vrcp.bf16.pop %v915
  %v923 = vmul.bf16 1065369472, %v922
  %v924 = vld [vmem:[%s9] sm:$0x1]
  %v925 = vunpack.c.l.bf16 %v917
  %v926 = vunpack.c.h.bf16 %v917
  %v927 = vunpack.c.l.bf16 %v919
  %v928 = vunpack.c.h.bf16 %v919
  %v929 = vunpack.c.l.bf16 %v921
  %v930 = vunpack.c.h.bf16 %v921
  %v931 = vunpack.c.l.bf16 %v923
  %v932 = vunpack.c.h.bf16 %v923
  %v934 = vlaneseq
  %v935 = vshrl.u32 %v934, 7
  %v936 = vsub.s32 0, %v935
  %v937 = vrot.slane %v924, %v936
  %v939 = vmul.f32 %v925, %v937
  %v940 = vmul.f32 %v926, %v937
  %v941 = vmul.f32 %v927, %v937
  %v942 = vmul.f32 %v928, %v937
  %v943 = vmul.f32 %v929, %v937
  %v944 = vmul.f32 %v930, %v937
  %v945 = vmul.f32 %v931, %v937
  %v946 = vmul.f32 %v932, %v937
  %vm947 = vcmask 326656
  %v948 = vsel %vm947, %v939, 0.0
  %949 = vadd.xlane.f32.xlu0 %v948
  %v950 = vpop.xlane.xlu0 %949
  %v951 = vsel %vm947, %v940, 0.0
  %952 = vadd.xlane.f32.xlu0 %v951
  %v953 = vpop.xlane.xlu0 %952
  %v954 = vsel %vm947, %v941, 0.0
  %955 = vadd.xlane.f32.xlu0 %v954
  %v956 = vpop.xlane.xlu0 %955
  %v957 = vsel %vm947, %v942, 0.0
  %958 = vadd.xlane.f32.xlu0 %v957
  %v959 = vpop.xlane.xlu0 %958
  %v960 = vsel %vm947, %v943, 0.0
  %961 = vadd.xlane.f32.xlu0 %v960
  %v962 = vpop.xlane.xlu0 %961
  %v963 = vsel %vm947, %v944, 0.0
  %964 = vadd.xlane.f32.xlu0 %v963
  %v965 = vpop.xlane.xlu0 %964
  %v966 = vsel %vm947, %v945, 0.0
  %967 = vadd.xlane.f32.xlu0 %v966
  %v968 = vpop.xlane.xlu0 %967
  %v969 = vsel %vm947, %v946, 0.0
  %970 = vadd.xlane.f32.xlu0 %v969
  %v971 = vpop.xlane.xlu0 %970
  %v972 = vld [vmem:[#allocation2] sm:$0x1]
  %v974 = vlaneseq
  %v975 = vshrl.u32 %v974, 7
  %v976 = vsub.s32 0, %v975
  %v977 = vrot.slane %v972, %v976
  %v979 = vadd.f32 %v950, %v977
  %v980 = vadd.f32 %v953, %v977
  %v981 = vadd.f32 %v956, %v977
  %v982 = vadd.f32 %v959, %v977
  %v983 = vadd.f32 %v962, %v977
  %v984 = vadd.f32 %v965, %v977
  %v985 = vadd.f32 %v968, %v977
  %v986 = vadd.f32 %v971, %v977
  %v987 = vxor.u32 %v979, 2147483648
  %v988 = vxor.u32 %v980, 2147483648
  %v989 = vxor.u32 %v981, 2147483648
  %v990 = vxor.u32 %v982, 2147483648
  %v991 = vxor.u32 %v983, 2147483648
  %v992 = vxor.u32 %v984, 2147483648
  %v993 = vxor.u32 %v985, 2147483648
  %v994 = vxor.u32 %v986, 2147483648
  %v995 = vmul.f32 %v987, 1.442695
  %v996 = vpow.pop %v995
  %v997 = vmul.f32 %v988, 1.442695
  %v998 = vpow.pop %v997
  %v999 = vmul.f32 %v989, 1.442695
  %v1000 = vpow.pop %v999
  %v1001 = vmul.f32 %v990, 1.442695
  %v1002 = vpow.pop %v1001
  %v1003 = vmul.f32 %v991, 1.442695
  %v1004 = vpow.pop %v1003
  %v1005 = vmul.f32 %v992, 1.442695
  %v1006 = vpow.pop %v1005
  %v1007 = vmul.f32 %v993, 1.442695
  %v1008 = vpow.pop %v1007
  %v1009 = vmul.f32 %v994, 1.442695
  %v1010 = vpow.pop %v1009
  %v1011 = vadd.f32 %v996, 1.0
  %v1012 = vadd.f32 %v998, 1.0
  %v1013 = vadd.f32 %v1000, 1.0
  %v1014 = vadd.f32 %v1002, 1.0
  %v1015 = vadd.f32 %v1004, 1.0
  %v1016 = vadd.f32 %v1006, 1.0
  %v1017 = vadd.f32 %v1008, 1.0
  %v1018 = vadd.f32 %v1010, 1.0
  %v1019 = vrcp.pop %v1011
  %v1020 = vmul.f32 1.0, %v1019
  %v1021 = vrcp.pop %v1012
  %v1022 = vmul.f32 1.0, %v1021
  %v1023 = vrcp.pop %v1013
  %v1024 = vmul.f32 1.0, %v1023
  %v1025 = vrcp.pop %v1014
  %v1026 = vmul.f32 1.0, %v1025
  %v1027 = vrcp.pop %v1015
  %v1028 = vmul.f32 1.0, %v1027
  %v1029 = vrcp.pop %v1016
  %v1030 = vmul.f32 1.0, %v1029
  %v1031 = vrcp.pop %v1017
  %v1032 = vmul.f32 1.0, %v1031
  %v1033 = vrcp.pop %v1018
  %v1034 = vmul.f32 1.0, %v1033
  %v1035 = vlaneseq
  %v1036 = vshrl.u32 %v1035, 7
  %v1037 = vcombine.high %v83, %v83
  %v1039 = vunpack.c.l.s4 1966171168
  %v1040 = vunpack.c.0.s8 %v1039
  %v1041 = vlaneseq
  %v1042 = vshrl.u32 %v1041, 7
  %v1043 = vsub.s32 %v1040, %v1042
  %v1044 = vrot.slane %v83, %v1043
  %v1046 = vunpack.c.l.s4 1966171168
  %v1047 = vunpack.c.0.s8 %v1046
  %v1048 = vlaneseq
  %v1049 = vshrl.u32 %v1048, 7
  %v1050 = vsub.s32 %v1047, %v1049
  %v1051 = vrot.slane %v1037, %v1050
  %v1052 = vcombine.high %v1044, %v1044
  %v1053 = vcombine.high %v1051, %v1051
  %v1055 = vunpack.c.l.s4 1966171168
  %v1056 = vunpack.c.0.s8 %v1055
  %v1057 = vlaneseq
  %v1058 = vshrl.u32 %v1057, 7
  %v1059 = vsub.s32 %v1056, %v1058
  %v1060 = vrot.slane %v1044, %v1059
  %v1062 = vunpack.c.l.s4 1966171168
  %v1063 = vunpack.c.0.s8 %v1062
  %v1064 = vlaneseq
  %v1065 = vshrl.u32 %v1064, 7
  %v1066 = vsub.s32 %v1063, %v1065
  %v1067 = vrot.slane %v1051, %v1066
  %v1069 = vunpack.c.l.s4 1966171168
  %v1070 = vunpack.c.0.s8 %v1069
  %v1071 = vlaneseq
  %v1072 = vshrl.u32 %v1071, 7
  %v1073 = vsub.s32 %v1070, %v1072
  %v1074 = vrot.slane %v1052, %v1073
  %v1076 = vunpack.c.l.s4 1966171168
  %v1077 = vunpack.c.0.s8 %v1076
  %v1078 = vlaneseq
  %v1079 = vshrl.u32 %v1078, 7
  %v1080 = vsub.s32 %v1077, %v1079
  %v1081 = vrot.slane %v1053, %v1080
  %v1082 = vcombine.high %v1060, %v1060
  %v1083 = vcombine.high %v1067, %v1067
  %v1084 = vcombine.high %v1074, %v1074
  %v1085 = vcombine.high %v1081, %v1081
  %v1086 = vlaneseq
  %v1087 = vshrl.u32 %v1086, 7
  %v1088 = vsub.s32 0, %v1087
  %v1089 = vrot.slane %v1060, %v1088
  %v1090 = vlaneseq
  %v1091 = vshrl.u32 %v1090, 7
  %v1092 = vsub.s32 0, %v1091
  %v1093 = vrot.slane %v1074, %v1092
  %v1094 = vlaneseq
  %v1095 = vshrl.u32 %v1094, 7
  %v1096 = vsub.s32 0, %v1095
  %v1097 = vrot.slane %v1082, %v1096
  %v1098 = vlaneseq
  %v1099 = vshrl.u32 %v1098, 7
  %v1100 = vsub.s32 0, %v1099
  %v1101 = vrot.slane %v1084, %v1100
  %v1102 = vlaneseq
  %v1103 = vshrl.u32 %v1102, 7
  %v1104 = vsub.s32 0, %v1103
  %v1105 = vrot.slane %v1067, %v1104
  %v1106 = vlaneseq
  %v1107 = vshrl.u32 %v1106, 7
  %v1108 = vsub.s32 0, %v1107
  %v1109 = vrot.slane %v1081, %v1108
  %v1110 = vlaneseq
  %v1111 = vshrl.u32 %v1110, 7
  %v1112 = vsub.s32 0, %v1111
  %v1113 = vrot.slane %v1083, %v1112
  %v1114 = vlaneseq
  %v1115 = vshrl.u32 %v1114, 7
  %v1116 = vsub.s32 0, %v1115
  %v1117 = vrot.slane %v1085, %v1116
  %vm1118 = vcmp.lt.s32.totalorder %v1036, %v1089
  %vm1119 = vcmp.lt.s32.totalorder %v1036, %v1093
  %vm1120 = vcmp.lt.s32.totalorder %v1036, %v1097
  %vm1121 = vcmp.lt.s32.totalorder %v1036, %v1101
  %vm1122 = vcmp.lt.s32.totalorder %v1036, %v1105
  %vm1123 = vcmp.lt.s32.totalorder %v1036, %v1109
  %vm1124 = vcmp.lt.s32.totalorder %v1036, %v1113
  %vm1125 = vcmp.lt.s32.totalorder %v1036, %v1117
  %1134 = vrot.lane.b32.xlu0 %v1020, 1
  %v1135 = vpop.permute.xlu0 %1134
  %1136 = vrot.lane.b32.xlu0 %v1022, 1
  %v1137 = vpop.permute.xlu0 %1136
  %1138 = vrot.lane.b32.xlu0 %v1024, 1
  %v1139 = vpop.permute.xlu0 %1138
  %1140 = vrot.lane.b32.xlu0 %v1026, 1
  %v1141 = vpop.permute.xlu0 %1140
  %1142 = vrot.lane.b32.xlu0 %v1028, 1
  %v1143 = vpop.permute.xlu0 %1142
  %1144 = vrot.lane.b32.xlu0 %v1030, 1
  %v1145 = vpop.permute.xlu0 %1144
  %1146 = vrot.lane.b32.xlu0 %v1032, 1
  %v1147 = vpop.permute.xlu0 %1146
  %1148 = vrot.lane.b32.xlu0 %v1034, 1
  %v1149 = vpop.permute.xlu0 %1148
  %v1158 = vsel %vm1118, %v1135, 0.0
  %v1159 = vsel %vm1119, %v1137, 0.0
  %v1160 = vsel %vm1120, %v1139, 0.0
  %v1161 = vsel %vm1121, %v1141, 0.0
  %v1162 = vsel %vm1122, %v1143, 0.0
  %v1163 = vsel %vm1123, %v1145, 0.0
  %v1164 = vsel %vm1124, %v1147, 0.0
  %v1165 = vsel %vm1125, %v1149, 0.0
  %v1166 = vpack.c.bf16 %v1158, %v1158
  %v1167 = vpack.c.bf16 %v1159, %v1159
  %v1168 = vpack.c.bf16 %v1160, %v1160
  %v1169 = vpack.c.bf16 %v1161, %v1161
  %v1170 = vpack.c.bf16 %v1162, %v1162
  %v1171 = vpack.c.bf16 %v1163, %v1163
  %v1172 = vpack.c.bf16 %v1164, %v1164
  %v1173 = vpack.c.bf16 %v1165, %v1165
  %1175 = vset.pattern.permute.xlu0 1
  %1176 = vperm.xlu0 %1175, %v1166
  %v1177 = vpop.permute.xlu0 %1176
  %1180 = vset.pattern.permute.xlu0 1
  %1181 = vperm.xlu0 %1180, %v1167
  %v1182 = vpop.permute.xlu0 %1181
  %1185 = vset.pattern.permute.xlu0 1
  %1186 = vperm.xlu0 %1185, %v1168
  %v1187 = vpop.permute.xlu0 %1186
  %1190 = vset.pattern.permute.xlu0 1
  %1191 = vperm.xlu0 %1190, %v1169
  %v1192 = vpop.permute.xlu0 %1191
  %1195 = vset.pattern.permute.xlu0 1
  %1196 = vperm.xlu0 %1195, %v1170
  %v1197 = vpop.permute.xlu0 %1196
  %1200 = vset.pattern.permute.xlu0 1
  %1201 = vperm.xlu0 %1200, %v1171
  %v1202 = vpop.permute.xlu0 %1201
  %1205 = vset.pattern.permute.xlu0 1
  %1206 = vperm.xlu0 %1205, %v1172
  %v1207 = vpop.permute.xlu0 %1206
  %1210 = vset.pattern.permute.xlu0 1
  %1211 = vperm.xlu0 %1210, %v1173
  %v1212 = vpop.permute.xlu0 %1211
  %v1214 = vmul.bf16 %v1177, %v74
  %v1215 = vmul.bf16 %v1182, %v75
  %v1216 = vmul.bf16 %v1187, %v76
  %v1217 = vmul.bf16 %v1192, %v77
  %v1218 = vmul.bf16 %v1197, %v78
  %v1219 = vmul.bf16 %v1202, %v79
  %v1220 = vmul.bf16 %v1207, %v80
  %v1221 = vmul.bf16 %v1212, %v81
  %v1222 = vunpack.c.l.bf16 %v1214
  %v1223 = vunpack.c.l.bf16 %v1215
  %v1224 = vunpack.c.l.bf16 %v1216
  %v1225 = vunpack.c.l.bf16 %v1217
  %v1226 = vunpack.c.l.bf16 %v1218
  %v1227 = vunpack.c.l.bf16 %v1219
  %v1228 = vunpack.c.l.bf16 %v1220
  %v1229 = vunpack.c.l.bf16 %v1221
  %v1230 = vsel %vm131, %v1222, 0.0
  %v1231 = vrot.slane %v1230, 4
  %v1232 = vadd.f32 %v1230, %v1231
  %v1233 = vrot.slane %v1232, 2
  %v1234 = vadd.f32 %v1232, %v1233
  %v1235 = vrot.slane %v1234, 1
  %v1236 = vadd.f32 %v1234, %v1235
  %v1237 = vsel %vm131, %v1223, 0.0
  %v1238 = vrot.slane %v1237, 4
  %v1239 = vadd.f32 %v1237, %v1238
  %v1240 = vrot.slane %v1239, 2
  %v1241 = vadd.f32 %v1239, %v1240
  %v1242 = vrot.slane %v1241, 1
  %v1243 = vadd.f32 %v1241, %v1242
  %v1244 = vsel %vm131, %v1224, 0.0
  %v1245 = vrot.slane %v1244, 4
  %v1246 = vadd.f32 %v1244, %v1245
  %v1247 = vrot.slane %v1246, 2
  %v1248 = vadd.f32 %v1246, %v1247
  %v1249 = vrot.slane %v1248, 1
  %v1250 = vadd.f32 %v1248, %v1249
  %v1251 = vsel %vm131, %v1225, 0.0
  %v1252 = vrot.slane %v1251, 4
  %v1253 = vadd.f32 %v1251, %v1252
  %v1254 = vrot.slane %v1253, 2
  %v1255 = vadd.f32 %v1253, %v1254
  %v1256 = vrot.slane %v1255, 1
  %v1257 = vadd.f32 %v1255, %v1256
  %v1258 = vsel %vm131, %v1226, 0.0
  %v1259 = vrot.slane %v1258, 4
  %v1260 = vadd.f32 %v1258, %v1259
  %v1261 = vrot.slane %v1260, 2
  %v1262 = vadd.f32 %v1260, %v1261
  %v1263 = vrot.slane %v1262, 1
  %v1264 = vadd.f32 %v1262, %v1263
  %v1265 = vsel %vm131, %v1227, 0.0
  %v1266 = vrot.slane %v1265, 4
  %v1267 = vadd.f32 %v1265, %v1266
  %v1268 = vrot.slane %v1267, 2
  %v1269 = vadd.f32 %v1267, %v1268
  %v1270 = vrot.slane %v1269, 1
  %v1271 = vadd.f32 %v1269, %v1270
  %v1272 = vsel %vm131, %v1228, 0.0
  %v1273 = vrot.slane %v1272, 4
  %v1274 = vadd.f32 %v1272, %v1273
  %v1275 = vrot.slane %v1274, 2
  %v1276 = vadd.f32 %v1274, %v1275
  %v1277 = vrot.slane %v1276, 1
  %v1278 = vadd.f32 %v1276, %v1277
  %v1279 = vsel %vm131, %v1229, 0.0
  %v1280 = vrot.slane %v1279, 4
  %v1281 = vadd.f32 %v1279, %v1280
  %v1282 = vrot.slane %v1281, 2
  %v1283 = vadd.f32 %v1281, %v1282
  %v1284 = vrot.slane %v1283, 1
  %v1285 = vadd.f32 %v1283, %v1284
  %v1286 = vpack.c.bf16 %v1236, %v1236
  %v1287 = vpack.c.bf16 %v1243, %v1243
  %v1288 = vpack.c.bf16 %v1250, %v1250
  %v1289 = vpack.c.bf16 %v1257, %v1257
  %v1290 = vpack.c.bf16 %v1264, %v1264
  %v1291 = vpack.c.bf16 %v1271, %v1271
  %v1292 = vpack.c.bf16 %v1278, %v1278
  %v1293 = vpack.c.bf16 %v1285, %v1285
  %v1294 = vld [vmem:[%s11] sm:$0xf]
  %v1295 = vld [vmem:[%s11 + $0x4] sm:$0xf]
  %v1296 = vld [vmem:[%s11 + $0x8] sm:$0xf]
  %v1297 = vld [vmem:[%s11 + $0xc] sm:$0xf]
  %v1298 = vld [vmem:[%s11 + $0x10] sm:$0xf]
  %v1299 = vld [vmem:[%s11 + $0x14] sm:$0xf]
  %v1300 = vld [vmem:[%s11 + $0x18] sm:$0xf]
  %v1301 = vld [vmem:[%s11 + $0x1c] sm:$0xf]
  %v1302 = vld [vmem:[%s11 + $0x20] sm:$0xf]
  %v1303 = vld [vmem:[%s11 + $0x24] sm:$0xf]
  %v1304 = vld [vmem:[%s12] sm:$0x1]
  %v1306 = vlaneseq
  %v1307 = vshrl.u32 %v1306, 7
  %v1308 = vsub.s32 0, %v1307
  %v1309 = vrot.slane %v1304, %v1308
  %v1319 = vunpack.c.l.b16 %v1286
  %v1320 = vunpack.c.l.b16 %v1287
  %v1321 = vunpack.c.l.b16 %v1288
  %v1322 = vunpack.c.l.b16 %v1289
  %v1323 = vunpack.c.l.b16 %v1290
  %v1324 = vunpack.c.l.b16 %v1291
  %v1325 = vunpack.c.l.b16 %v1292
  %v1326 = vunpack.c.l.b16 %v1293
  %vm1327 = vcmask 1041409
  %v1328 = vsel %vm1327, %v1320, %v1319
  %vm1329 = vcmask 1042434
  %v1330 = vsel %vm1329, %v1321, %v1328
  %vm1331 = vcmask 1043459
  %v1332 = vsel %vm1331, %v1322, %v1330
  %vm1333 = vcmask 1044484
  %v1334 = vsel %vm1333, %v1323, %v1332
  %vm1335 = vcmask 1045509
  %v1336 = vsel %vm1335, %v1324, %v1334
  %vm1337 = vcmask 1046534
  %v1338 = vsel %vm1337, %v1325, %v1336
  %vm1339 = vcmask 1047559
  %v1340 = vsel %vm1339, %v1326, %v1338
  %v1341 = vpack.c.b16 %v1340, %v1340
  %v1352 = vunpack.c.l.b16 %v1294
  %v1353 = vunpack.c.l.b16 %v1295
  %v1354 = vunpack.c.l.b16 %v1296
  %v1355 = vunpack.c.l.b16 %v1297
  %v1356 = vunpack.c.l.b16 %v1298
  %v1357 = vunpack.c.l.b16 %v1299
  %v1358 = vunpack.c.l.b16 %v1300
  %v1359 = vunpack.c.l.b16 %v1301
  %v1360 = vunpack.c.l.b16 %v1302
  %v1361 = vunpack.c.l.b16 %v1303
  %v1362 = vpack.c.b16 %v1353, %v1352
  %v1363 = vpack.c.b16 %v1355, %v1354
  %v1364 = vpack.c.b16 %v1357, %v1356
  %v1365 = vpack.c.b16 %v1359, %v1358
  %v1366 = vpack.c.b16 %v1361, %v1360
  %v1373 = vsel %vm131, %v1341, 0
  %1375 = vmatprep.subr.bf16.mxu0 0
  %1376 = vmatpush1.bf16.msra.mxu0 0
  %1377 = vmatprep.subr.bf16.mxu0 0
  %1378 = vmatpush1.bf16.msra.mxu0 0
  %1379 = vmatprep.subr.bf16.mxu0 0
  %1380 = vmatpush1.bf16.msra.mxu0 0
  %1381 = vmatprep.subr.bf16.mxu0 0
  %1382 = vmatpush1.bf16.msra.mxu0 %v1366
  %1383 = vmatprep.subr.bf16.mxu0 0
  %1384 = vmatpush1.bf16.msra.mxu0 %v1365
  %1385 = vmatprep.subr.bf16.mxu0 0
  %1386 = vmatpush1.bf16.msra.mxu0 %v1364
  %1387 = vmatprep.subr.bf16.mxu0 0
  %1388 = vmatpush1.bf16.msra.mxu0 %v1363
  %1389 = vmatprep.subr.bf16.mxu0 0
  %1390 = vmatpush1.bf16.msra.mxu0 %v1362
  %1391 = vmatprep.subr.bf16.mxu0 0
  %1392 = vmatpush2.bf16.msra.mxu0 0
  %1393 = vmatprep.subr.bf16.mxu0 0
  %1394 = vmatpush2.bf16.msra.mxu0 0
  %1395 = vmatprep.subr.bf16.mxu0 0
  %1396 = vmatpush2.bf16.msra.mxu0 0
  %1397 = vmatprep.subr.bf16.mxu0 0
  %1398 = vmatpush2.bf16.msra.mxu0 0
  %1399 = vmatprep.subr.bf16.mxu0 0
  %1400 = vmatpush2.bf16.msra.mxu0 0
  %1401 = vmatprep.subr.bf16.mxu0 0
  %1402 = vmatpush2.bf16.msra.mxu0 0
  %1403 = vmatprep.subr.bf16.mxu0 0
  %1404 = vmatpush2.bf16.msra.mxu0 0
  %1405 = vmatprep.subr.bf16.mxu0 0
  %1406 = vmatpush2.bf16.msra.mxu0 0
  %1407 = vmatprep.mubr.bf16.mxu0 0
  %1408 = vmatmul.mubr.bf16.gmra.mxu0 %v1373
  %v1409 = vpop.f32.mrf.mxu0
  %v1410 = vadd.f32 %v1309, %v1409
  %v1411 = vpop.f32.mrf.mxu0
  %v1412 = vpop.f32.mrf.mxu0
  %v1413 = vpop.f32.mrf.mxu0
  %1414 = vdwg.mxu0
  %v1415 = vpack.c.bf16 %v1410, %v1410
  %v1416 = vld [vmem:[%s13] sm:$0xf]
  %v1417 = vld [vmem:[%s13 + $0x4] sm:$0xf]
  %v1418 = vld [vmem:[%s13 + $0x8] sm:$0xf]
  %v1419 = vld [vmem:[%s13 + $0xc] sm:$0xf]
  %v1420 = vld [vmem:[%s13 + $0x10] sm:$0xf]
  %v1421 = vld [vmem:[%s13 + $0x14] sm:$0xf]
  %v1422 = vld [vmem:[%s13 + $0x18] sm:$0xf]
  %v1423 = vld [vmem:[%s13 + $0x1c] sm:$0xf]
  %v1424 = vld [vmem:[%s13 + $0x20] sm:$0xf]
  %v1425 = vld [vmem:[%s13 + $0x24] sm:$0xf]
  %v1426 = vld [vmem:[%s14] sm:$0xf]
  %v1427 = vld [vmem:[%s14 + $0x4] sm:$0xf]
  %v1428 = vld [vmem:[%s14 + $0x8] sm:$0xf]
  %v1429 = vld [vmem:[%s14 + $0xc] sm:$0xf]
  %v1430 = vld [vmem:[%s14 + $0x10] sm:$0xf]
  %v1431 = vld [vmem:[%s14 + $0x14] sm:$0xf]
  %v1432 = vld [vmem:[%s14 + $0x18] sm:$0xf]
  %v1433 = vld [vmem:[%s14 + $0x1c] sm:$0xf]
  %v1434 = vld [vmem:[%s14 + $0x20] sm:$0xf]
  %v1435 = vld [vmem:[%s14 + $0x24] sm:$0xf]
  %v1446 = vunpack.c.l.b16 %v1426
  %v1447 = vunpack.c.l.b16 %v1427
  %v1448 = vunpack.c.l.b16 %v1428
  %v1449 = vunpack.c.l.b16 %v1429
  %v1450 = vunpack.c.l.b16 %v1430
  %v1451 = vunpack.c.l.b16 %v1431
  %v1452 = vunpack.c.l.b16 %v1432
  %v1453 = vunpack.c.l.b16 %v1433
  %v1454 = vunpack.c.l.b16 %v1434
  %v1455 = vunpack.c.l.b16 %v1435
  %v1456 = vpack.c.b16 %v1447, %v1446
  %v1457 = vpack.c.b16 %v1449, %v1448
  %v1458 = vpack.c.b16 %v1451, %v1450
  %v1459 = vpack.c.b16 %v1453, %v1452
  %v1460 = vpack.c.b16 %v1455, %v1454
  %1466 = vmatprep.subr.bf16.mxu0 0
  %1467 = vmatpush1.bf16.msra.mxu0 0
  %1468 = vmatprep.subr.bf16.mxu0 0
  %1469 = vmatpush1.bf16.msra.mxu0 0
  %1470 = vmatprep.subr.bf16.mxu0 0
  %1471 = vmatpush1.bf16.msra.mxu0 0
  %1472 = vmatprep.subr.bf16.mxu0 0
  %1473 = vmatpush1.bf16.msra.mxu0 %v1460
  %1474 = vmatprep.subr.bf16.mxu0 0
  %1475 = vmatpush1.bf16.msra.mxu0 %v1459
  %1476 = vmatprep.subr.bf16.mxu0 0
  %1477 = vmatpush1.bf16.msra.mxu0 %v1458
  %1478 = vmatprep.subr.bf16.mxu0 0
  %1479 = vmatpush1.bf16.msra.mxu0 %v1457
  %1480 = vmatprep.subr.bf16.mxu0 0
  %1481 = vmatpush1.bf16.msra.mxu0 %v1456
  %1482 = vmatprep.subr.bf16.mxu0 0
  %1483 = vmatpush2.bf16.msra.mxu0 0
  %1484 = vmatprep.subr.bf16.mxu0 0
  %1485 = vmatpush2.bf16.msra.mxu0 0
  %1486 = vmatprep.subr.bf16.mxu0 0
  %1487 = vmatpush2.bf16.msra.mxu0 0
  %1488 = vmatprep.subr.bf16.mxu0 0
  %1489 = vmatpush2.bf16.msra.mxu0 0
  %1490 = vmatprep.subr.bf16.mxu0 0
  %1491 = vmatpush2.bf16.msra.mxu0 0
  %1492 = vmatprep.subr.bf16.mxu0 0
  %1493 = vmatpush2.bf16.msra.mxu0 0
  %1494 = vmatprep.subr.bf16.mxu0 0
  %1495 = vmatpush2.bf16.msra.mxu0 0
  %1496 = vmatprep.subr.bf16.mxu0 0
  %1497 = vmatpush2.bf16.msra.mxu0 0
  %1498 = vmatprep.mubr.bf16.mxu0 0
  %1499 = vmatmul.mubr.bf16.gmra.mxu0 %v133
  %v1500 = vpop.f32.mrf.mxu0
  %v1501 = vadd.f32 0.0, %v1500
  %v1502 = vpop.f32.mrf.mxu0
  %v1503 = vpop.f32.mrf.mxu0
  %v1504 = vpop.f32.mrf.mxu0
  %1505 = vdwg.mxu0
  %v1516 = vunpack.c.l.b16 %v1416
  %v1517 = vunpack.c.l.b16 %v1417
  %v1518 = vunpack.c.l.b16 %v1418
  %v1519 = vunpack.c.l.b16 %v1419
  %v1520 = vunpack.c.l.b16 %v1420
  %v1521 = vunpack.c.l.b16 %v1421
  %v1522 = vunpack.c.l.b16 %v1422
  %v1523 = vunpack.c.l.b16 %v1423
  %v1524 = vunpack.c.l.b16 %v1424
  %v1525 = vunpack.c.l.b16 %v1425
  %v1526 = vpack.c.b16 %v1517, %v1516
  %v1527 = vpack.c.b16 %v1519, %v1518
  %v1528 = vpack.c.b16 %v1521, %v1520
  %v1529 = vpack.c.b16 %v1523, %v1522
  %v1530 = vpack.c.b16 %v1525, %v1524
  %v1537 = vsel %vm131, %v1415, 0
  %1539 = vmatprep.subr.bf16.mxu0 0
  %1540 = vmatpush1.bf16.msra.mxu0 0
  %1541 = vmatprep.subr.bf16.mxu0 0
  %1542 = vmatpush1.bf16.msra.mxu0 0
  %1543 = vmatprep.subr.bf16.mxu0 0
  %1544 = vmatpush1.bf16.msra.mxu0 0
  %1545 = vmatprep.subr.bf16.mxu0 0
  %1546 = vmatpush1.bf16.msra.mxu0 %v1530
  %1547 = vmatprep.subr.bf16.mxu0 0
  %1548 = vmatpush1.bf16.msra.mxu0 %v1529
  %1549 = vmatprep.subr.bf16.mxu0 0
  %1550 = vmatpush1.bf16.msra.mxu0 %v1528
  %1551 = vmatprep.subr.bf16.mxu0 0
  %1552 = vmatpush1.bf16.msra.mxu0 %v1527
  %1553 = vmatprep.subr.bf16.mxu0 0
  %1554 = vmatpush1.bf16.msra.mxu0 %v1526
  %1555 = vmatprep.subr.bf16.mxu0 0
  %1556 = vmatpush2.bf16.msra.mxu0 0
  %1557 = vmatprep.subr.bf16.mxu0 0
  %1558 = vmatpush2.bf16.msra.mxu0 0
  %1559 = vmatprep.subr.bf16.mxu0 0
  %1560 = vmatpush2.bf16.msra.mxu0 0
  %1561 = vmatprep.subr.bf16.mxu0 0
  %1562 = vmatpush2.bf16.msra.mxu0 0
  %1563 = vmatprep.subr.bf16.mxu0 0
  %1564 = vmatpush2.bf16.msra.mxu0 0
  %1565 = vmatprep.subr.bf16.mxu0 0
  %1566 = vmatpush2.bf16.msra.mxu0 0
  %1567 = vmatprep.subr.bf16.mxu0 0
  %1568 = vmatpush2.bf16.msra.mxu0 0
  %1569 = vmatprep.subr.bf16.mxu0 0
  %1570 = vmatpush2.bf16.msra.mxu0 0
  %1571 = vmatprep.mubr.bf16.mxu0 0
  %1572 = vmatmul.mubr.bf16.gmra.mxu0 %v1537
  %v1573 = vpop.f32.mrf.mxu0
  %v1574 = vadd.f32 %v1501, %v1573
  %v1575 = vpop.f32.mrf.mxu0
  %v1576 = vpop.f32.mrf.mxu0
  %v1577 = vpop.f32.mrf.mxu0
  %1578 = vdwg.mxu0
  %v1579 = vld [vmem:[%s15] sm:$0x1]
  %v1581 = vlaneseq
  %v1582 = vshrl.u32 %v1581, 7
  %v1583 = vsub.s32 0, %v1582
  %v1584 = vrot.slane %v1579, %v1583
  %v1586 = vadd.f32 %v1574, %v1584
  %v1587 = vpack.c.bf16 %v1586, %v1586
  %v1588 = vxor.u32 %v1587, 2147516416
  %v1590 = vmul.bf16 %v1588, 1069105081
  %v1591 = vpow.bf16.pop %v1590
  %v1592 = vadd.bf16 %v1591, 1065369472
  %v1593 = vrcp.bf16.pop %v1592
  %v1594 = vmul.bf16 1065369472, %v1593
  %v1595 = vld [vmem:[%s16] sm:$0xf]
  %v1596 = vld [vmem:[%s16 + $0x4] sm:$0xf]
  %v1597 = vld [vmem:[%s16 + $0x8] sm:$0xf]
  %v1598 = vld [vmem:[%s16 + $0xc] sm:$0xf]
  %v1599 = vld [vmem:[%s16 + $0x10] sm:$0xf]
  %v1600 = vld [vmem:[%s16 + $0x14] sm:$0xf]
  %v1601 = vld [vmem:[%s16 + $0x18] sm:$0xf]
  %v1602 = vld [vmem:[%s16 + $0x1c] sm:$0xf]
  %v1603 = vld [vmem:[%s16 + $0x20] sm:$0xf]
  %v1604 = vld [vmem:[%s16 + $0x24] sm:$0xf]
  %v1605 = vld [vmem:[%s17] sm:$0x1]
  %v1607 = vlaneseq
  %v1608 = vshrl.u32 %v1607, 7
  %v1609 = vsub.s32 0, %v1608
  %v1610 = vrot.slane %v1605, %v1609
  %v1622 = vunpack.c.l.b16 %v1595
  %v1623 = vunpack.c.l.b16 %v1596
  %v1624 = vunpack.c.l.b16 %v1597
  %v1625 = vunpack.c.l.b16 %v1598
  %v1626 = vunpack.c.l.b16 %v1599
  %v1627 = vunpack.c.l.b16 %v1600
  %v1628 = vunpack.c.l.b16 %v1601
  %v1629 = vunpack.c.l.b16 %v1602
  %v1630 = vunpack.c.l.b16 %v1603
  %v1631 = vunpack.c.l.b16 %v1604
  %v1632 = vpack.c.b16 %v1623, %v1622
  %v1633 = vpack.c.b16 %v1625, %v1624
  %v1634 = vpack.c.b16 %v1627, %v1626
  %v1635 = vpack.c.b16 %v1629, %v1628
  %v1636 = vpack.c.b16 %v1631, %v1630
  %v1643 = vsel %vm131, %v1594, 0
  %1645 = vmatprep.subr.bf16.mxu0 0
  %1646 = vmatpush1.bf16.msra.mxu0 0
  %1647 = vmatprep.subr.bf16.mxu0 0
  %1648 = vmatpush1.bf16.msra.mxu0 0
  %1649 = vmatprep.subr.bf16.mxu0 0
  %1650 = vmatpush1.bf16.msra.mxu0 0
  %1651 = vmatprep.subr.bf16.mxu0 0
  %1652 = vmatpush1.bf16.msra.mxu0 %v1636
  %1653 = vmatprep.subr.bf16.mxu0 0
  %1654 = vmatpush1.bf16.msra.mxu0 %v1635
  %1655 = vmatprep.subr.bf16.mxu0 0
  %1656 = vmatpush1.bf16.msra.mxu0 %v1634
  %1657 = vmatprep.subr.bf16.mxu0 0
  %1658 = vmatpush1.bf16.msra.mxu0 %v1633
  %1659 = vmatprep.subr.bf16.mxu0 0
  %1660 = vmatpush1.bf16.msra.mxu0 %v1632
  %1661 = vmatprep.subr.bf16.mxu0 0
  %1662 = vmatpush2.bf16.msra.mxu0 0
  %1663 = vmatprep.subr.bf16.mxu0 0
  %1664 = vmatpush2.bf16.msra.mxu0 0
  %1665 = vmatprep.subr.bf16.mxu0 0
  %1666 = vmatpush2.bf16.msra.mxu0 0
  %1667 = vmatprep.subr.bf16.mxu0 0
  %1668 = vmatpush2.bf16.msra.mxu0 0
  %1669 = vmatprep.subr.bf16.mxu0 0
  %1670 = vmatpush2.bf16.msra.mxu0 0
  %1671 = vmatprep.subr.bf16.mxu0 0
  %1672 = vmatpush2.bf16.msra.mxu0 0
  %1673 = vmatprep.subr.bf16.mxu0 0
  %1674 = vmatpush2.bf16.msra.mxu0 0
  %1675 = vmatprep.subr.bf16.mxu0 0
  %1676 = vmatpush2.bf16.msra.mxu0 0
  %1677 = vmatprep.mubr.bf16.mxu0 0
  %1678 = vmatmul.mubr.bf16.gmra.mxu0 %v1643
  %v1679 = vpop.f32.mrf.mxu0
  %v1680 = vadd.f32 %v1610, %v1679
  %v1681 = vpop.f32.mrf.mxu0
  %v1682 = vpop.f32.mrf.mxu0
  %v1683 = vpop.f32.mrf.mxu0
  %1684 = vdwg.mxu0
  %v1685 = vpack.c.bf16 %v1680, %v1680
  %v1686 = vxor.u32 %v1685, 2147516416
  %v1688 = vmul.bf16 %v1686, 1069105081
  %v1689 = vpow.bf16.pop %v1688
  %v1690 = vadd.bf16 %v1689, 1065369472
  %v1691 = vrcp.bf16.pop %v1690
  %v1692 = vmul.bf16 1065369472, %v1691
  %v1693 = vld [vmem:[%s18] sm:$0x1]
  %v1694 = vunpack.c.l.bf16 %v1692
  %v1696 = vlaneseq
  %v1697 = vshrl.u32 %v1696, 7
  %v1698 = vsub.s32 0, %v1697
  %v1699 = vrot.slane %v1693, %v1698
  %v1701 = vmul.f32 %v1694, %v1699
  %v1702 = vsel %vm947, %v1701, 0.0
  %1703 = vadd.xlane.f32.xlu0 %v1702
  %v1704 = vpop.xlane.xlu0 %1703
  %v1705 = vld [vmem:[#allocation3] sm:$0x1]
  %v1707 = vlaneseq
  %v1708 = vshrl.u32 %v1707, 7
  %v1709 = vsub.s32 0, %v1708
  %v1710 = vrot.slane %v1705, %v1709
  %v1712 = vadd.f32 %v1704, %v1710
  %v1713 = vadd.f32 %v1712, %v82
  %v1714 = vxor.u32 %v1713, 2147483648
  %v1715 = vmul.f32 %v1714, 1.442695
  %v1716 = vpow.pop %v1715
  %v1717 = vadd.f32 %v1716, 1.0
  %v1718 = vrcp.pop %v1717
  %v1719 = vmul.f32 1.0, %v1718
  %1721 = vset.pattern.permute.xlu0 0
  %1722 = vperm.xlu0 %1721, %v1719
  %v1723 = vpop.permute.xlu0 %1722
  %1725 = vst [vmem:[%s20] sm:$0xff] %v1723
  %v1726 = vmax.f32 %v1713, 0.0
  %v1727 = vand.u32 2147483647, %v1713
  %v1728 = vsub.f32 0.0, %v1727
  %v1729 = vmul.f32 %v1728, 1.442695
  %v1730 = vpow.pop %v1729
  %v1731 = vadd.f32 %v1730, 1.0
  %v1732 = vlog2.pop %v1731
  %v1733 = vmul.f32 %v1732, 0.6931472
  %v1734 = vadd.f32 %v1726, %v1733
  %v1735 = vsub.f32 %v1713, %v1734
  %v1736 = vmax.f32 %v1735, -100.0
  %v1737 = vsub.f32 0.0, %v1734
  %v1738 = vmax.f32 %v1737, -100.0
  %1740 = vrot.lane.b32.xlu0 %v1736, 2
  %v1741 = vpop.permute.xlu0 %1740
  %v1743 = vmul.f32 %v82, %v1741
  %v1744 = vsub.f32 1.0, %v82
  %1746 = vrot.lane.b32.xlu0 %v1738, 2
  %v1747 = vpop.permute.xlu0 %1746
  %v1749 = vmul.f32 %v1744, %v1747
  %v1750 = vadd.f32 %v1743, %v1749
  %v1751 = vsub.f32 0.0, %v1750
  %1753 = vrot.lane.b32.xlu0 %v82, 127
  %v1754 = vpop.permute.xlu0 %1753
  %v1756 = vmul.f32 %v1751, %v1754
  %1758 = vrot.lane.b32.xlu0 %v1756, 126
  %v1759 = vpop.permute.xlu0 %1758
  %vm1761 = vcmask 7168
  %v1762 = vsel %vm1761, %v1759, 0.0
  %1763 = vadd.xlane.f32.xlu0 %v1762
  %v1764 = vpop.xlane.xlu0 %1763
  %v1765 = vrot.slane %v1764, 4
  %v1766 = vadd.f32 %v1764, %v1765
  %v1767 = vrot.slane %v1766, 2
  %v1768 = vadd.f32 %v1766, %v1767
  %v1769 = vrot.slane %v1768, 1
  %v1770 = vadd.f32 %v1768, %v1769
  %s1771 = vtos %v1770
  %v1772 = vstv %s1771
  %1773 = vst [vmem:[%s21] sm:$0xff] %v1772
  // Predicated region
  $region82: #{model_forward.1} parent=0 // pred_check
    _
  $region83: #{model_forward.1} parent=0 // pred_check_branch
    %1775 = sbr.rel (0) target = $region85
  $region84: #{model_forward.1} parent=0 // pred_region
    _
  $region85: #{model_forward.1} parent=0 // pred_fallthru
    _
  // Predicated region
  $region86: #{model_forward.1} parent=0 // pred_check
    _
  $region87: #{model_forward.1} parent=0 // pred_check_branch
    %1777 = sbr.rel (0) target = $region89
  $region88: #{model_forward.1} parent=0 // pred_region
    _
  $region89: #{model_forward.1} parent=0 // pred_fallthru
    _
  // Predicated region
  $region90: #{model_forward.1} parent=0 // pred_check
    _
  $region91: #{model_forward.1} parent=0 // pred_check_branch
    %1779 = sbr.rel (0) target = $region93
  $region92: #{model_forward.1} parent=0 // pred_region
    _
  $region93: #{model_forward.1} parent=0 // pred_fallthru
    _
  // Predicated region
  $region94: #{model_forward.1} parent=0 // pred_check
    _
  $region95: #{model_forward.1} parent=0 // pred_check_branch
    %1781 = sbr.rel (0) target = $region97
  $region96: #{model_forward.1} parent=0 // pred_region
    _
  $region97: #{model_forward.1} parent=0 // pred_fallthru
    _

</llo_original>
